<compile_context>
chip_gen: v7x
topology: tpu7x:2x2x1
jax: 0.10.0
libtpu: 0.0.40
codegen_flags: <defaults>
</compile_context>

<pallas_src>
import math

import jax
import jax.numpy as jnp
import numpy as np
from jax import lax
from jax.experimental import pallas as pl
from jax.experimental.pallas import tpu as pltpu


# ---------- numerics helpers (shared by kernel and reference) ----------------
def _softplus(x):
    return jnp.maximum(x, 0.0) + jnp.log(1.0 + jnp.exp(-jnp.abs(x)))


def _sigmoid(x):
    return 1.0 / (1.0 + jnp.exp(-x))


def _softmax(x):
    # Exact softmax (no approx reciprocal) -- this kernel is HBM-bound, so the
    # full-precision divide costs nothing and keeps the sharpen-amplified error
    # well inside tolerance.
    m = jnp.max(x, axis=-1, keepdims=True)
    e = jnp.exp(x - m)
    return e / jnp.sum(e, axis=-1, keepdims=True)


def _circ_shift(x, shift):
    """Circular shift right by `shift` along the last (lane) axis of a 2D array."""
    n = x.shape[-1]
    shift = shift % n
    if shift == 0:
        return x
    if n % 128 == 0:
        # Lane-aligned: single XLU lane rotate (free slot vs. the VPU).
        return pltpu.roll(x, shift, axis=1)
    # Small / lane-unaligned N (e.g. the N=16 test shape): static slice concat.
    return jnp.concatenate([x[:, -shift:], x[:, :-shift]], axis=1)


# --------------------------------- kernel -----------------------------------
def _read_head_kernel(x_ref, wfc_ref, bfc_ref, mem_ref, lastw_ref, o_ref):
    bt, N, M = mem_ref.shape
    mem = mem_ref[...]                                   # (bt, N, M), single read

    # fc_read: (bt, ctrl) @ (ctrl, out_pad) on the MXU (out_pad lane-aligned,
    # zero columns are free).  HIGHEST precision => faithful f32 semantics.
    out = jnp.dot(x_ref[...], wfc_ref[...],
                  preferred_element_type=jnp.float32,
                  precision=lax.Precision.HIGHEST) + bfc_ref[...]

    # _split_cols over read_vector = [M, 1, 1, 3, 1]  (padded lanes unused).
    K = out[:, 0:M]
    B = out[:, M:M + 1]
    G = out[:, M + 1:M + 2]
    S = out[:, M + 2:M + 5]
    L = out[:, M + 5:M + 6]

    k = jnp.tanh(K)
    beta = _softplus(B)
    g = _sigmoid(G)
    s = _softmax(S)
    gamma = 1.0 + _softplus(L)

    # --- content addressing: cosine similarity (matches torch semantics) ----
    k_e = k + 1e-16                                           # (bt, M)
    mem_e = mem + 1e-16                                       # (bt, N, M)
    if M >= 128:
        # Production sizes: batched matmul on the MXU.
        k8 = jnp.broadcast_to(k_e[:, None, :], (bt, 8, M))
        dots = jnp.einsum('bqm,bnm->bqn', k8, mem_e,
                          preferred_element_type=jnp.float32)[:, 0, :]
    else:
        # Small M: VPU multiply + lane reduce is cheaper than bt tiny matmuls.
        dots = jnp.sum(mem_e * k_e[:, None, :], axis=2)       # (bt, N)
    k_norm = jnp.sqrt(jnp.sum(k_e * k_e, axis=1, keepdims=True))   # (bt, 1)
    m_norm = jnp.sqrt(jnp.sum(mem_e * mem_e, axis=2))              # (bt, N)
    sim = dots / jnp.maximum(m_norm * k_norm, 1e-8)
    wc = _softmax(beta * sim)                                      # (bt, N)

    # --- interpolation gate --------------------------------------------------
    wg = g * wc + (1.0 - g) * lastw_ref[...]

    # --- 3-tap circular convolution with shift distribution s ----------------
    w_tilde = (_circ_shift(wg, 1) * s[:, 0:1]          # wg[i-1]
               + wg * s[:, 1:2]                        # wg[i]
               + _circ_shift(wg, N - 1) * s[:, 2:3])   # wg[i+1]

    # --- sharpening (w_tilde > 0, so pow == exp(gamma * log)) ----------------
    w_pow = jnp.exp(gamma * jnp.log(w_tilde))
    w = w_pow / (jnp.sum(w_pow, axis=1, keepdims=True) + 1e-16)

    # --- read: r[b, m] = sum_n w[b, n] * mem[b, n, m] -------------------------
    if N >= 128:
        w8 = jnp.broadcast_to(w[:, None, :], (bt, 8, N))
        r = jnp.einsum('bqn,bnm->bqm', w8, mem,
                       preferred_element_type=jnp.float32)[:, 0, :]
    else:
        r = jnp.sum(mem * w[:, :, None], axis=1)               # (bt, M)

    # --- lane-dense packed output: [ r | w | zero pad ] -> one unmasked store -
    pad = o_ref.shape[1] - (M + N)
    parts = [r, w]
    if pad > 0:
        parts.append(jnp.zeros((bt, pad), jnp.float32))
    o_ref[...] = jnp.concatenate(parts, axis=1).astype(o_ref.dtype)


# -------------------------------- wrapper ------------------------------------
def _pick_batch_tile(batch, row_bytes, target_bytes):
    """Largest bt dividing batch (bt % 8 == 0 or bt == batch) whose per-step
    `memory` tile is <= target_bytes; falls back to the smallest legal tile.

    The target (~512 KiB) amortizes the ~0.35 us fixed per-grid-step cost while
    keeping the (bt, N, M) live value bounded (no vreg spills) and the
    double-buffered VMEM footprint far under v7x's 64 MiB."""
    best = None
    for bt in range(1, batch + 1):
        if batch % bt:
            continue
        if bt % 8 and bt != batch:
            continue
        if best is None or bt * row_bytes <= target_bytes:
            best = bt
    return best


def read_head_forward(x, last_w, w_fc, b_fc, memory,
                      *, target_tile_bytes=512 * 1024):
    batch, ctrl = x.shape
    _, N, M = memory.shape
    out_dim = w_fc.shape[1]

    # Lane-pad the fc output dim to a multiple of 128: lane-aligned MXU result
    # tile and cheap static lane slices for K/B/G/S/L.  Zero columns are free.
    out_pad = 128 * pl.cdiv(out_dim, 128)
    w_fc_p = jnp.pad(w_fc, ((0, 0), (0, out_pad - out_dim)))
    b_fc_p = jnp.pad(b_fc, ((0, 0), (0, out_pad - out_dim)))

    # Packed (r | w) output slab, lane-padded to a 128 multiple (lane-dense store).
    rw_lanes = 128 * pl.cdiv(M + N, 128)

    # NOTE: for production, cast `memory` to bf16 here (accumulation stays f32)
    # to halve the dominant HBM traffic; kept f32 so the f32 reference check is tight.
    bt = _pick_batch_tile(batch, N * M * 4, target_tile_bytes)
    grid = (batch // bt,)

    slab = pl.pallas_call(
        _read_head_kernel,
        grid=grid,
        in_specs=[
            pl.BlockSpec((bt, ctrl), lambda i: (i, 0)),         # x
            pl.BlockSpec((ctrl, out_pad), lambda i: (0, 0)),    # fc weight (T, padded)
            pl.BlockSpec((1, out_pad), lambda i: (0, 0)),       # fc bias (padded)
            pl.BlockSpec((bt, N, M), lambda i: (i, 0, 0)),      # memory
            pl.BlockSpec((bt, N), lambda i: (i, 0)),            # last_w
        ],
        out_specs=pl.BlockSpec((bt, rw_lanes), lambda i: (i, 0)),
        out_shape=jax.ShapeDtypeStruct((batch, rw_lanes), jnp.float32),
        compiler_params=pltpu.CompilerParams(
            dimension_semantics=("parallel",),        # megacore-shardable when grid >= 2
            vmem_limit_bytes=32 * 1024 * 1024),       # raise v5e's 16 MiB default; safe on v6e/v7x
    )(x, w_fc_p, b_fc_p, memory, last_w)

    r = slab[:, :M]
    w = slab[:, M:M + N]
    return r, w


# ------------------------- pure-JAX reference (no Pallas) ---------------------
def read_head_reference(x, last_w, w_fc, b_fc, memory):
    M = memory.shape[2]
    hp = lax.Precision.HIGHEST
    out = jnp.dot(x, w_fc, precision=hp) + b_fc
    K, B, G, S, L = (out[:, 0:M], out[:, M:M + 1], out[:, M + 1:M + 2],
                     out[:, M + 2:M + 5], out[:, M + 5:M + 6])
    k = jnp.tanh(K)
    beta = _softplus(B)
    g = _sigmoid(G)
    s = _softmax(S)
    gamma = 1.0 + _softplus(L)

    k_e = k + 1e-16
    mem_e = memory + 1e-16
    dots = jnp.einsum('bnm,bm->bn', mem_e, k_e, precision=hp)
    sim = dots / jnp.maximum(
        jnp.linalg.norm(mem_e, axis=2) * jnp.linalg.norm(k_e, axis=1, keepdims=True),
        1e-8)
    wc = _softmax(beta * sim)
    wg = g * wc + (1.0 - g) * last_w
    w_tilde = (jnp.roll(wg, 1, axis=1) * s[:, 0:1]
               + wg * s[:, 1:2]
               + jnp.roll(wg, -1, axis=1) * s[:, 2:3])
    w_pow = w_tilde ** gamma
    w = w_pow / (jnp.sum(w_pow, axis=1, keepdims=True) + 1e-16)
    r = jnp.einsum('bn,bnm->bm', w, memory, precision=hp)
    return r, w


# ---------------------------------- main --------------------------------------
if __name__ == "__main__":
    batch, ctrl_size, N, M = 16, 32, 16, 8         # memory: N rows of width M
    read_vector = [M, 1, 1, 3, 1]
    out_dim = sum(read_vector)                     # = M + 6

    key = jax.random.PRNGKey(0)
    k1, k2, k3, k4, k5 = jax.random.split(key, 5)

    # fc_read params: xavier_uniform_(gain=1.4) on (out_dim, ctrl) weight,
    # bias ~ Normal(0, 0.01).  Stored transposed as (ctrl, out_dim) for x @ W.
    bound = 1.4 * math.sqrt(6.0 / (ctrl_size + out_dim))
    w_fc = jax.random.uniform(k1, (ctrl_size, out_dim), jnp.float32, -bound, bound)
    b_fc = 0.01 * jax.random.normal(k2, (1, out_dim), jnp.float32)

    # controller output, memory contents, previous read weights
    x = 0.5 * jax.random.normal(k3, (batch, ctrl_size), jnp.float32)
    memory = 0.5 * jax.random.normal(k4, (batch, N, M), jnp.float32)
    last_w = jax.nn.softmax(jax.random.normal(k5, (batch, N), jnp.float32), axis=-1)

    r, w = read_head_forward(x, last_w, w_fc, b_fc, memory)
    jax.block_until_ready((r, w))

    r_ref, w_ref = read_head_reference(x, last_w, w_fc, b_fc, memory)
    np.testing.assert_allclose(np.asarray(w), np.asarray(w_ref), rtol=1e-3, atol=1e-4)
    np.testing.assert_allclose(np.asarray(r), np.asarray(r_ref), rtol=1e-3, atol=1e-4)
    assert r.shape == (batch, M) and w.shape == (batch, N)

    print("KERNEL_OK")
</pallas_src>

<mosaic_0001>
module attributes {stable_mosaic.version = 11 : i64} {
  func.func @_read_head_kernel(%arg0: i32, %arg1: memref<16x32xf32, #tpu.memory_space<vmem>>, %arg2: memref<32x128xf32, #tpu.memory_space<vmem>>, %arg3: memref<1x128xf32, #tpu.memory_space<vmem>>, %arg4: memref<16x16x8xf32, #tpu.memory_space<vmem>>, %arg5: memref<16x16xf32, #tpu.memory_space<vmem>>, %arg6: memref<16x128xf32, #tpu.memory_space<vmem>>) attributes {dimension_semantics = [#tpu.dimension_semantics<parallel>], iteration_bounds = array<i64: 1>, scalar_prefetch = 0 : i64, scratch_operands = 0 : i64, tpu.core_type = #tpu.core_type<tc>, window_params = [{transform_indices = @transform_0, window_bounds = array<i64: 16, 32>}, {pipeline_mode = #tpu.pipeline_mode<synchronous>, transform_indices = @transform_1, window_bounds = array<i64: 32, 128>}, {pipeline_mode = #tpu.pipeline_mode<synchronous>, transform_indices = @transform_2, window_bounds = array<i64: 1, 128>}, {transform_indices = @transform_3, window_bounds = array<i64: 16, 16, 8>}, {transform_indices = @transform_4, window_bounds = array<i64: 16, 16>}, {transform_indices = @transform_5, window_bounds = array<i64: 16, 128>}]} {
    %c0 = arith.constant 0 : index
    %c0_0 = arith.constant 0 : index
    %c0_1 = arith.constant 0 : index
    %0 = vector.load %arg4[%c0, %c0_0, %c0_1] : memref<16x16x8xf32, #tpu.memory_space<vmem>>, vector<16x16x8xf32>
    %c0_2 = arith.constant 0 : index
    %c0_3 = arith.constant 0 : index
    %1 = vector.load %arg1[%c0_2, %c0_3] : memref<16x32xf32, #tpu.memory_space<vmem>>, vector<16x32xf32>
    %c0_4 = arith.constant 0 : index
    %c0_5 = arith.constant 0 : index
    %2 = vector.load %arg2[%c0_4, %c0_5] : memref<32x128xf32, #tpu.memory_space<vmem>>, vector<32x128xf32>
    %cst = arith.constant dense<0.000000e+00> : vector<16x128xf32>
    %3 = tpu.matmul %1, %2, %cst {dimension_numbers = #tpu.dot_dimension_numbers<[1], [0], [0], [1], [0, 0, 1, 1], [], []>, precision = #tpu.contract_precision<fp32>} : vector<16x32xf32>, vector<32x128xf32>, vector<16x128xf32> -> vector<16x128xf32>
    %c0_6 = arith.constant 0 : index
    %c0_7 = arith.constant 0 : index
    %4 = vector.load %arg3[%c0_6, %c0_7] : memref<1x128xf32, #tpu.memory_space<vmem>>, vector<1x128xf32>
    %5 = vector.broadcast %4 : vector<1x128xf32> to vector<16x128xf32>
    %6 = arith.addf %3, %5 : vector<16x128xf32>
    %7 = vector.extract_strided_slice %6 {offsets = [0, 0], sizes = [16, 8], strides = [1, 1]} : vector<16x128xf32> to vector<16x8xf32>
    %8 = vector.extract_strided_slice %6 {offsets = [0, 8], sizes = [16, 1], strides = [1, 1]} : vector<16x128xf32> to vector<16x1xf32>
    %9 = vector.extract_strided_slice %6 {offsets = [0, 9], sizes = [16, 1], strides = [1, 1]} : vector<16x128xf32> to vector<16x1xf32>
    %10 = vector.extract_strided_slice %6 {offsets = [0, 10], sizes = [16, 3], strides = [1, 1]} : vector<16x128xf32> to vector<16x3xf32>
    %11 = vector.extract_strided_slice %6 {offsets = [0, 13], sizes = [16, 1], strides = [1, 1]} : vector<16x128xf32> to vector<16x1xf32>
    %12 = math.tanh %7 : vector<16x8xf32>
    %cst_8 = arith.constant 0.000000e+00 : f32
    %13 = vector.broadcast %cst_8 : f32 to vector<16x1xf32>
    %14 = arith.maximumf %8, %13 : vector<16x1xf32>
    %15 = math.absf %8 : vector<16x1xf32>
    %cst_9 = arith.constant 0.000000e+00 : f32
    %16 = vector.broadcast %cst_9 : f32 to vector<16x1xf32>
    %17 = arith.subf %16, %15 : vector<16x1xf32>
    %18 = math.exp %17 : vector<16x1xf32>
    %cst_10 = arith.constant 1.000000e+00 : f32
    %19 = vector.broadcast %cst_10 : f32 to vector<16x1xf32>
    %20 = arith.addf %19, %18 : vector<16x1xf32>
    %21 = math.log %20 : vector<16x1xf32>
    %22 = arith.addf %14, %21 : vector<16x1xf32>
    %cst_11 = arith.constant 0.000000e+00 : f32
    %23 = vector.broadcast %cst_11 : f32 to vector<16x1xf32>
    %24 = arith.subf %23, %9 : vector<16x1xf32>
    %25 = math.exp %24 : vector<16x1xf32>
    %cst_12 = arith.constant 1.000000e+00 : f32
    %26 = vector.broadcast %cst_12 : f32 to vector<16x1xf32>
    %27 = arith.addf %26, %25 : vector<16x1xf32>
    %cst_13 = arith.constant 1.000000e+00 : f32
    %28 = vector.broadcast %cst_13 : f32 to vector<16x1xf32>
    %29 = arith.divf %28, %27 : vector<16x1xf32>
    %cst_14 = arith.constant dense<0xFF800000> : vector<16xf32>
    %30 = vector.multi_reduction <maximumf>, %10, %cst_14 [1] : vector<16x3xf32> to vector<16xf32>
    %31 = vector.shape_cast %30 : vector<16xf32> to vector<16x1xf32>
    %32 = vector.broadcast %31 : vector<16x1xf32> to vector<16x3xf32>
    %33 = arith.subf %10, %32 : vector<16x3xf32>
    %34 = math.exp %33 : vector<16x3xf32>
    %cst_15 = arith.constant dense<0.000000e+00> : vector<16xf32>
    %35 = vector.multi_reduction <add>, %34, %cst_15 [1] : vector<16x3xf32> to vector<16xf32>
    %36 = vector.shape_cast %35 : vector<16xf32> to vector<16x1xf32>
    %37 = vector.broadcast %36 : vector<16x1xf32> to vector<16x3xf32>
    %38 = arith.divf %34, %37 : vector<16x3xf32>
    %cst_16 = arith.constant 0.000000e+00 : f32
    %39 = vector.broadcast %cst_16 : f32 to vector<16x1xf32>
    %40 = arith.maximumf %11, %39 : vector<16x1xf32>
    %41 = math.absf %11 : vector<16x1xf32>
    %cst_17 = arith.constant 0.000000e+00 : f32
    %42 = vector.broadcast %cst_17 : f32 to vector<16x1xf32>
    %43 = arith.subf %42, %41 : vector<16x1xf32>
    %44 = math.exp %43 : vector<16x1xf32>
    %cst_18 = arith.constant 1.000000e+00 : f32
    %45 = vector.broadcast %cst_18 : f32 to vector<16x1xf32>
    %46 = arith.addf %45, %44 : vector<16x1xf32>
    %47 = math.log %46 : vector<16x1xf32>
    %48 = arith.addf %40, %47 : vector<16x1xf32>
    %cst_19 = arith.constant 1.000000e+00 : f32
    %49 = vector.broadcast %cst_19 : f32 to vector<16x1xf32>
    %50 = arith.addf %49, %48 : vector<16x1xf32>
    %cst_20 = arith.constant 1.000000e-16 : f32
    %51 = vector.broadcast %cst_20 : f32 to vector<16x8xf32>
    %52 = arith.addf %12, %51 : vector<16x8xf32>
    %cst_21 = arith.constant 1.000000e-16 : f32
    %53 = vector.broadcast %cst_21 : f32 to vector<16x16x8xf32>
    %54 = arith.addf %0, %53 : vector<16x16x8xf32>
    %55 = vector.shape_cast %52 : vector<16x8xf32> to vector<16x1x8xf32>
    %56 = vector.broadcast %55 : vector<16x1x8xf32> to vector<16x16x8xf32>
    %57 = arith.mulf %54, %56 : vector<16x16x8xf32>
    %cst_22 = arith.constant dense<0.000000e+00> : vector<16x16xf32>
    %58 = vector.multi_reduction <add>, %57, %cst_22 [2] : vector<16x16x8xf32> to vector<16x16xf32>
    %59 = arith.mulf %52, %52 : vector<16x8xf32>
    %cst_23 = arith.constant dense<0.000000e+00> : vector<16xf32>
    %60 = vector.multi_reduction <add>, %59, %cst_23 [1] : vector<16x8xf32> to vector<16xf32>
    %61 = vector.shape_cast %60 : vector<16xf32> to vector<16x1xf32>
    %62 = math.sqrt %61 : vector<16x1xf32>
    %63 = arith.mulf %54, %54 : vector<16x16x8xf32>
    %cst_24 = arith.constant dense<0.000000e+00> : vector<16x16xf32>
    %64 = vector.multi_reduction <add>, %63, %cst_24 [2] : vector<16x16x8xf32> to vector<16x16xf32>
    %65 = math.sqrt %64 : vector<16x16xf32>
    %66 = vector.broadcast %62 : vector<16x1xf32> to vector<16x16xf32>
    %67 = arith.mulf %65, %66 : vector<16x16xf32>
    %cst_25 = arith.constant 9.99999993E-9 : f32
    %68 = vector.broadcast %cst_25 : f32 to vector<16x16xf32>
    %69 = arith.maximumf %67, %68 : vector<16x16xf32>
    %70 = arith.divf %58, %69 : vector<16x16xf32>
    %71 = vector.broadcast %22 : vector<16x1xf32> to vector<16x16xf32>
    %72 = arith.mulf %71, %70 : vector<16x16xf32>
    %cst_26 = arith.constant dense<0xFF800000> : vector<16xf32>
    %73 = vector.multi_reduction <maximumf>, %72, %cst_26 [1] : vector<16x16xf32> to vector<16xf32>
    %74 = vector.shape_cast %73 : vector<16xf32> to vector<16x1xf32>
    %75 = vector.broadcast %74 : vector<16x1xf32> to vector<16x16xf32>
    %76 = arith.subf %72, %75 : vector<16x16xf32>
    %77 = math.exp %76 : vector<16x16xf32>
    %cst_27 = arith.constant dense<0.000000e+00> : vector<16xf32>
    %78 = vector.multi_reduction <add>, %77, %cst_27 [1] : vector<16x16xf32> to vector<16xf32>
    %79 = vector.shape_cast %78 : vector<16xf32> to vector<16x1xf32>
    %80 = vector.broadcast %79 : vector<16x1xf32> to vector<16x16xf32>
    %81 = arith.divf %77, %80 : vector<16x16xf32>
    %82 = vector.broadcast %29 : vector<16x1xf32> to vector<16x16xf32>
    %83 = arith.mulf %82, %81 : vector<16x16xf32>
    %cst_28 = arith.constant 1.000000e+00 : f32
    %84 = vector.broadcast %cst_28 : f32 to vector<16x1xf32>
    %85 = arith.subf %84, %29 : vector<16x1xf32>
    %c0_29 = arith.constant 0 : index
    %c0_30 = arith.constant 0 : index
    %86 = vector.load %arg5[%c0_29, %c0_30] : memref<16x16xf32, #tpu.memory_space<vmem>>, vector<16x16xf32>
    %87 = vector.broadcast %85 : vector<16x1xf32> to vector<16x16xf32>
    %88 = arith.mulf %87, %86 : vector<16x16xf32>
    %89 = arith.addf %83, %88 : vector<16x16xf32>
    %90 = vector.extract_strided_slice %89 {offsets = [0, 15], sizes = [16, 1], strides = [1, 1]} : vector<16x16xf32> to vector<16x1xf32>
    %91 = vector.extract_strided_slice %89 {offsets = [0, 0], sizes = [16, 15], strides = [1, 1]} : vector<16x16xf32> to vector<16x15xf32>
    %92 = tpu.concatenate %90, %91 in 1 : vector<16x1xf32>, vector<16x15xf32> -> vector<16x16xf32>
    %93 = vector.extract_strided_slice %38 {offsets = [0, 0], sizes = [16, 1], strides = [1, 1]} : vector<16x3xf32> to vector<16x1xf32>
    %94 = vector.broadcast %93 : vector<16x1xf32> to vector<16x16xf32>
    %95 = arith.mulf %92, %94 : vector<16x16xf32>
    %96 = vector.extract_strided_slice %38 {offsets = [0, 1], sizes = [16, 1], strides = [1, 1]} : vector<16x3xf32> to vector<16x1xf32>
    %97 = vector.broadcast %96 : vector<16x1xf32> to vector<16x16xf32>
    %98 = arith.mulf %89, %97 : vector<16x16xf32>
    %99 = arith.addf %95, %98 : vector<16x16xf32>
    %100 = vector.extract_strided_slice %89 {offsets = [0, 1], sizes = [16, 15], strides = [1, 1]} : vector<16x16xf32> to vector<16x15xf32>
    %101 = vector.extract_strided_slice %89 {offsets = [0, 0], sizes = [16, 1], strides = [1, 1]} : vector<16x16xf32> to vector<16x1xf32>
    %102 = tpu.concatenate %100, %101 in 1 : vector<16x15xf32>, vector<16x1xf32> -> vector<16x16xf32>
    %103 = vector.extract_strided_slice %38 {offsets = [0, 2], sizes = [16, 1], strides = [1, 1]} : vector<16x3xf32> to vector<16x1xf32>
    %104 = vector.broadcast %103 : vector<16x1xf32> to vector<16x16xf32>
    %105 = arith.mulf %102, %104 : vector<16x16xf32>
    %106 = arith.addf %99, %105 : vector<16x16xf32>
    %107 = math.log %106 : vector<16x16xf32>
    %108 = vector.broadcast %50 : vector<16x1xf32> to vector<16x16xf32>
    %109 = arith.mulf %108, %107 : vector<16x16xf32>
    %110 = math.exp %109 : vector<16x16xf32>
    %cst_31 = arith.constant dense<0.000000e+00> : vector<16xf32>
    %111 = vector.multi_reduction <add>, %110, %cst_31 [1] : vector<16x16xf32> to vector<16xf32>
    %112 = vector.shape_cast %111 : vector<16xf32> to vector<16x1xf32>
    %cst_32 = arith.constant 1.000000e-16 : f32
    %113 = vector.broadcast %cst_32 : f32 to vector<16x1xf32>
    %114 = arith.addf %112, %113 : vector<16x1xf32>
    %115 = vector.broadcast %114 : vector<16x1xf32> to vector<16x16xf32>
    %116 = arith.divf %110, %115 : vector<16x16xf32>
    %117 = vector.shape_cast %116 : vector<16x16xf32> to vector<16x16x1xf32>
    %118 = vector.broadcast %117 : vector<16x16x1xf32> to vector<16x16x8xf32>
    %119 = arith.mulf %0, %118 : vector<16x16x8xf32>
    %cst_33 = arith.constant dense<0.000000e+00> : vector<16x8xf32>
    %120 = vector.multi_reduction <add>, %119, %cst_33 [1] : vector<16x16x8xf32> to vector<16x8xf32>
    %cst_34 = arith.constant 0.000000e+00 : f32
    %121 = vector.broadcast %cst_34 : f32 to vector<16x104xf32>
    %122 = tpu.concatenate %120, %116, %121 in 1 : vector<16x8xf32>, vector<16x16xf32>, vector<16x104xf32> -> vector<16x128xf32>
    %c0_35 = arith.constant 0 : index
    %c0_36 = arith.constant 0 : index
    %123 = vector.load %arg6[%c0_35, %c0_36] : memref<16x128xf32, #tpu.memory_space<vmem>>, vector<16x128xf32>
    tpu.vector_store %arg6[%c0_35, %c0_36], %122 {strides = array<i32>} : memref<16x128xf32, #tpu.memory_space<vmem>>, vector<16x128xf32>,
    return
  }
  func.func @transform_0(%arg0: i32) -> (i32, i32) {
    %c0_i32 = arith.constant 0 : i32
    %c0_i32_0 = arith.constant 0 : i32
    return %arg0, %c0_i32 : i32, i32
  }
  func.func @transform_1(%arg0: i32) -> (i32, i32) {
    %c0_i32 = arith.constant 0 : i32
    %c0_i32_0 = arith.constant 0 : i32
    %c0_i32_1 = arith.constant 0 : i32
    return %c0_i32, %c0_i32_0 : i32, i32
  }
  func.func @transform_2(%arg0: i32) -> (i32, i32) {
    %c0_i32 = arith.constant 0 : i32
    %c0_i32_0 = arith.constant 0 : i32
    %c0_i32_1 = arith.constant 0 : i32
    return %c0_i32, %c0_i32_0 : i32, i32
  }
  func.func @transform_3(%arg0: i32) -> (i32, i32, i32) {
    %c0_i32 = arith.constant 0 : i32
    %c0_i32_0 = arith.constant 0 : i32
    %c0_i32_1 = arith.constant 0 : i32
    return %arg0, %c0_i32, %c0_i32_0 : i32, i32, i32
  }
  func.func @transform_4(%arg0: i32) -> (i32, i32) {
    %c0_i32 = arith.constant 0 : i32
    %c0_i32_0 = arith.constant 0 : i32
    return %arg0, %c0_i32 : i32, i32
  }
  func.func @transform_5(%arg0: i32) -> (i32, i32) {
    %c0_i32 = arith.constant 0 : i32
    %c0_i32_0 = arith.constant 0 : i32
    return %arg0, %c0_i32 : i32, i32
  }
}

</mosaic_0001>

<llo_original>
// kernel: tpu_custom_call.1
$region0: #{tpu_custom_call.1}
  #allocation0 [shape = 'u32[]', space=smem, size = 0x4, offset = 0x4, fixed_abs, tag = 'smem constant byte address 0x4 - core index']
  #allocation1 [shape = 'u32[144,128]{1,0:T(1,128)}', space=vmem, size = 0x12000, scoped, tag = 'internal scratch']
  %s0 = inlined_call_operand.vmem [shape: f32[16,32], index: 0, kind: input, shape index: {}]
  %s1 = inlined_call_operand.vmem [shape: f32[32,128], index: 1, kind: input, shape index: {}]
  %s2 = inlined_call_operand.vmem [shape: f32[1,128], index: 2, kind: input, shape index: {}]
  %s3 = inlined_call_operand.vmem [shape: f32[16,16,8], index: 3, kind: input, shape index: {}]
  %s4 = inlined_call_operand.vmem [shape: f32[16,16], index: 4, kind: input, shape index: {}]
  %s5 = inlined_call_operand.hbm [shape: f32[16,128], index: 5, kind: output, shape index: {}]
  %s6 = sld [smem:[#allocation0]]
  $region30: #{tpu_custom_call.1} parent=0
    _
  %s8 = ssub.s32 1, %s6
  %s9 = scalar_select 0, %s8, %s6
  $region1: #{tpu_custom_call.1} parent=0
    #allocation2 [shape = 'u8[8192]{0}', space=vmem, size = 0x2000, scoped, tag = 'output window, operand 0, single buffered']
    #allocation3 [shape = 's32[1]{0}', space=sflag, size = 0x4, scoped, tag = 'scoped memory for tpu_custom_call.1']
    %10 = vsyncpa [#allocation3], 0
    // Predicated region
    $region2: #{tpu_custom_call.1} parent=1 // pred_check
      _
    $region3: #{tpu_custom_call.1} parent=1 // pred_check_branch
      %12 = sbr.rel (0) target = $region5
    $region4: #{tpu_custom_call.1} parent=1 // pred_region
      _
    $region5: #{tpu_custom_call.1} parent=1 // pred_fallthru
      _
    // Predicated region
    $region6: #{tpu_custom_call.1} parent=1 // pred_check
      _
    $region7: #{tpu_custom_call.1} parent=1 // pred_check_branch
      %14 = sbr.rel (0) target = $region9
    $region8: #{tpu_custom_call.1} parent=1 // pred_region
      _
    $region9: #{tpu_custom_call.1} parent=1 // pred_fallthru
      _
    // Predicated region
    $region10: #{tpu_custom_call.1} parent=1 // pred_check
      _
    $region11: #{tpu_custom_call.1} parent=1 // pred_check_branch
      %16 = sbr.rel (0) target = $region13
    $region12: #{tpu_custom_call.1} parent=1 // pred_region
      _
    $region13: #{tpu_custom_call.1} parent=1 // pred_fallthru
      _
    // Predicated region
    $region14: #{tpu_custom_call.1} parent=1 // pred_check
      _
    $region15: #{tpu_custom_call.1} parent=1 // pred_check_branch
      %18 = sbr.rel (0) target = $region17
    $region16: #{tpu_custom_call.1} parent=1 // pred_region
      _
    $region17: #{tpu_custom_call.1} parent=1 // pred_fallthru
      _
    // Predicated region
    $region18: #{tpu_custom_call.1} parent=1 // pred_check
      _
    $region19: #{tpu_custom_call.1} parent=1 // pred_check_branch
      %20 = sbr.rel (0) target = $region21
    $region20: #{tpu_custom_call.1} parent=1 // pred_region
      _
    $region21: #{tpu_custom_call.1} parent=1 // pred_fallthru
      _
    %v21 = vld [vmem:[%s3] sm:$0xff]
    %v22 = vld [vmem:[%s3 + $0x8] sm:$0xff]
    %v23 = vld [vmem:[%s3 + $0x10] sm:$0xff]
    %v24 = vld [vmem:[%s3 + $0x18] sm:$0xff]
    %v25 = vld [vmem:[%s3 + $0x20] sm:$0xff]
    %v26 = vld [vmem:[%s3 + $0x28] sm:$0xff]
    %v27 = vld [vmem:[%s3 + $0x30] sm:$0xff]
    %v28 = vld [vmem:[%s3 + $0x38] sm:$0xff]
    %v29 = vld [vmem:[%s3 + $0x40] sm:$0xff]
    %v30 = vld [vmem:[%s3 + $0x48] sm:$0xff]
    %v31 = vld [vmem:[%s3 + $0x50] sm:$0xff]
    %v32 = vld [vmem:[%s3 + $0x58] sm:$0xff]
    %v33 = vld [vmem:[%s3 + $0x60] sm:$0xff]
    %v34 = vld [vmem:[%s3 + $0x68] sm:$0xff]
    %v35 = vld [vmem:[%s3 + $0x70] sm:$0xff]
    %v36 = vld [vmem:[%s3 + $0x78] sm:$0xff]
    %v37 = vld [vmem:[%s3 + $0x80] sm:$0xff]
    %v38 = vld [vmem:[%s3 + $0x88] sm:$0xff]
    %v39 = vld [vmem:[%s3 + $0x90] sm:$0xff]
    %v40 = vld [vmem:[%s3 + $0x98] sm:$0xff]
    %v41 = vld [vmem:[%s3 + $0xa0] sm:$0xff]
    %v42 = vld [vmem:[%s3 + $0xa8] sm:$0xff]
    %v43 = vld [vmem:[%s3 + $0xb0] sm:$0xff]
    %v44 = vld [vmem:[%s3 + $0xb8] sm:$0xff]
    %v45 = vld [vmem:[%s3 + $0xc0] sm:$0xff]
    %v46 = vld [vmem:[%s3 + $0xc8] sm:$0xff]
    %v47 = vld [vmem:[%s3 + $0xd0] sm:$0xff]
    %v48 = vld [vmem:[%s3 + $0xd8] sm:$0xff]
    %v49 = vld [vmem:[%s3 + $0xe0] sm:$0xff]
    %v50 = vld [vmem:[%s3 + $0xe8] sm:$0xff]
    %v51 = vld [vmem:[%s3 + $0xf0] sm:$0xff]
    %v52 = vld [vmem:[%s3 + $0xf8] sm:$0xff]
    %v53 = vld [vmem:[%s0] sm:$0xff]
    %v54 = vld [vmem:[%s0 + $0x8] sm:$0xff]
    %v55 = vld [vmem:[%s1] sm:$0xff]
    %v56 = vld [vmem:[%s1 + $0x8] sm:$0xff]
    %v57 = vld [vmem:[%s1 + $0x10] sm:$0xff]
    %v58 = vld [vmem:[%s1 + $0x18] sm:$0xff]
    %v59 = vld [vmem:[%s2] sm:$0x1]
    %v61 = vlaneseq
    %v62 = vshrl.u32 %v61, 7
    %v63 = vsub.s32 0, %v62
    %v64 = vrot.slane %v59, %v63
    %vm66 = vcmask 261120
    %v68 = vsel %vm66, %v53, 0
    %v71 = vsel %vm66, %v54, 0
    %73 = vmatprep.subr.mxu0 0.0
    %v74 = vand.u32 %v55, 4294901760
    %75 = vmatpush1.msra.mxu0 %v74
    %76 = vmatprep.subr.mxu0 0.0
    %v77 = vand.u32 %v56, 4294901760
    %78 = vmatpush1.msra.mxu0 %v77
    %79 = vmatprep.subr.mxu0 0.0
    %v80 = vand.u32 %v57, 4294901760
    %81 = vmatpush1.msra.mxu0 %v80
    %82 = vmatprep.subr.mxu0 0.0
    %v83 = vand.u32 %v58, 4294901760
    %84 = vmatpush1.msra.mxu0 %v83
    %85 = vmatprep.subr.mxu0 0.0
    %86 = vmatpush1.msra.mxu0 0.0
    %87 = vmatprep.subr.mxu0 0.0
    %88 = vmatpush1.msra.mxu0 0.0
    %89 = vmatprep.subr.mxu0 0.0
    %90 = vmatpush1.msra.mxu0 0.0
    %91 = vmatprep.subr.mxu0 0.0
    %92 = vmatpush1.msra.mxu0 0.0
    %93 = vmatprep.subr.mxu0 0.0
    %94 = vmatpush1.msra.mxu0 0.0
    %95 = vmatprep.subr.mxu0 0.0
    %96 = vmatpush1.msra.mxu0 0.0
    %97 = vmatprep.subr.mxu0 0.0
    %98 = vmatpush1.msra.mxu0 0.0
    %99 = vmatprep.subr.mxu0 0.0
    %100 = vmatpush1.msra.mxu0 0.0
    %101 = vmatprep.subr.mxu0 0.0
    %102 = vmatpush1.msra.mxu0 0.0
    %103 = vmatprep.subr.mxu0 0.0
    %104 = vmatpush1.msra.mxu0 0.0
    %105 = vmatprep.subr.mxu0 0.0
    %106 = vmatpush1.msra.mxu0 0.0
    %107 = vmatprep.subr.mxu0 0.0
    %108 = vmatpush1.msra.mxu0 0.0
    %109 = vmatprep.subr.mxu0 0.0
    %110 = vmatpush1.msra.mxu0 0.0
    %111 = vmatprep.subr.mxu0 0.0
    %112 = vmatpush1.msra.mxu0 0.0
    %113 = vmatprep.subr.mxu0 0.0
    %114 = vmatpush1.msra.mxu0 0.0
    %115 = vmatprep.subr.mxu0 0.0
    %116 = vmatpush1.msra.mxu0 0.0
    %117 = vmatprep.subr.mxu0 0.0
    %118 = vmatpush1.msra.mxu0 0.0
    %119 = vmatprep.subr.mxu0 0.0
    %120 = vmatpush1.msra.mxu0 0.0
    %121 = vmatprep.subr.mxu0 0.0
    %122 = vmatpush1.msra.mxu0 0.0
    %123 = vmatprep.subr.mxu0 0.0
    %124 = vmatpush1.msra.mxu0 0.0
    %125 = vmatprep.subr.mxu0 0.0
    %126 = vmatpush1.msra.mxu0 0.0
    %127 = vmatprep.subr.mxu0 0.0
    %128 = vmatpush1.msra.mxu0 0.0
    %129 = vmatprep.subr.mxu0 0.0
    %130 = vmatpush1.msra.mxu0 0.0
    %131 = vmatprep.subr.mxu0 0.0
    %132 = vmatpush1.msra.mxu0 0.0
    %133 = vmatprep.subr.mxu0 0.0
    %134 = vmatpush1.msra.mxu0 0.0
    %135 = vmatprep.subr.mxu0 0.0
    %136 = vmatpush1.msra.mxu0 0.0
    %137 = vmatprep.subr.mxu0 0.0
    %138 = vmatpush1.msra.mxu0 0.0
    %139 = vmatprep.subr.mxu0 0.0
    %140 = vmatpush1.msra.mxu0 0.0
    %141 = vmatprep.mubr.f32.mxu0 0.0
    %v142 = vand.u32 %v68, 4294901760
    %v143 = vsub.f32 %v68, %v142
    %v144 = vand.u32 %v143, 4294901760
    %v145 = vsub.f32 %v143, %v144
    %v146 = vand.u32 %v145, 4294901760
    %147 = vmatmul.mubr.f32.gmra.mrb[0].mxu0 %v146
    %v148 = vpop.f32.mrb[0].mxu0
    %v149 = vadd.f32 %v64, %v148
    %v150 = vpop.f32.mrb[0].mxu0
    %151 = vmatprep.mubr.f32.mxu0 0.0
    %v152 = vand.u32 %v71, 4294901760
    %v153 = vsub.f32 %v71, %v152
    %v154 = vand.u32 %v153, 4294901760
    %v155 = vsub.f32 %v153, %v154
    %v156 = vand.u32 %v155, 4294901760
    %157 = vmatmul.mubr.f32.gmra.mrb[0].mxu0 %v156
    %v158 = vpop.f32.mrb[0].mxu0
    %v159 = vadd.f32 %v64, %v158
    %v160 = vpop.f32.mrb[0].mxu0
    %161 = vdwg.mxu0
    %162 = vmatprep.subr.mxu0 0.0
    %v163 = vand.u32 %v55, 4294901760
    %v164 = vsub.f32 %v55, %v163
    %v165 = vand.u32 %v164, 4294901760
    %v166 = vsub.f32 %v164, %v165
    %v167 = vand.u32 %v166, 4294901760
    %168 = vmatpush1.msra.mxu0 %v167
    %169 = vmatprep.subr.mxu0 0.0
    %v170 = vand.u32 %v56, 4294901760
    %v171 = vsub.f32 %v56, %v170
    %v172 = vand.u32 %v171, 4294901760
    %v173 = vsub.f32 %v171, %v172
    %v174 = vand.u32 %v173, 4294901760
    %175 = vmatpush1.msra.mxu0 %v174
    %176 = vmatprep.subr.mxu0 0.0
    %v177 = vand.u32 %v57, 4294901760
    %v178 = vsub.f32 %v57, %v177
    %v179 = vand.u32 %v178, 4294901760
    %v180 = vsub.f32 %v178, %v179
    %v181 = vand.u32 %v180, 4294901760
    %182 = vmatpush1.msra.mxu0 %v181
    %183 = vmatprep.subr.mxu0 0.0
    %v184 = vand.u32 %v58, 4294901760
    %v185 = vsub.f32 %v58, %v184
    %v186 = vand.u32 %v185, 4294901760
    %v187 = vsub.f32 %v185, %v186
    %v188 = vand.u32 %v187, 4294901760
    %189 = vmatpush1.msra.mxu0 %v188
    %190 = vmatprep.subr.mxu0 0.0
    %191 = vmatpush1.msra.mxu0 0.0
    %192 = vmatprep.subr.mxu0 0.0
    %193 = vmatpush1.msra.mxu0 0.0
    %194 = vmatprep.subr.mxu0 0.0
    %195 = vmatpush1.msra.mxu0 0.0
    %196 = vmatprep.subr.mxu0 0.0
    %197 = vmatpush1.msra.mxu0 0.0
    %198 = vmatprep.subr.mxu0 0.0
    %199 = vmatpush1.msra.mxu0 0.0
    %200 = vmatprep.subr.mxu0 0.0
    %201 = vmatpush1.msra.mxu0 0.0
    %202 = vmatprep.subr.mxu0 0.0
    %203 = vmatpush1.msra.mxu0 0.0
    %204 = vmatprep.subr.mxu0 0.0
    %205 = vmatpush1.msra.mxu0 0.0
    %206 = vmatprep.subr.mxu0 0.0
    %207 = vmatpush1.msra.mxu0 0.0
    %208 = vmatprep.subr.mxu0 0.0
    %209 = vmatpush1.msra.mxu0 0.0
    %210 = vmatprep.subr.mxu0 0.0
    %211 = vmatpush1.msra.mxu0 0.0
    %212 = vmatprep.subr.mxu0 0.0
    %213 = vmatpush1.msra.mxu0 0.0
    %214 = vmatprep.subr.mxu0 0.0
    %215 = vmatpush1.msra.mxu0 0.0
    %216 = vmatprep.subr.mxu0 0.0
    %217 = vmatpush1.msra.mxu0 0.0
    %218 = vmatprep.subr.mxu0 0.0
    %219 = vmatpush1.msra.mxu0 0.0
    %220 = vmatprep.subr.mxu0 0.0
    %221 = vmatpush1.msra.mxu0 0.0
    %222 = vmatprep.subr.mxu0 0.0
    %223 = vmatpush1.msra.mxu0 0.0
    %224 = vmatprep.subr.mxu0 0.0
    %225 = vmatpush1.msra.mxu0 0.0
    %226 = vmatprep.subr.mxu0 0.0
    %227 = vmatpush1.msra.mxu0 0.0
    %228 = vmatprep.subr.mxu0 0.0
    %229 = vmatpush1.msra.mxu0 0.0
    %230 = vmatprep.subr.mxu0 0.0
    %231 = vmatpush1.msra.mxu0 0.0
    %232 = vmatprep.subr.mxu0 0.0
    %233 = vmatpush1.msra.mxu0 0.0
    %234 = vmatprep.subr.mxu0 0.0
    %235 = vmatpush1.msra.mxu0 0.0
    %236 = vmatprep.subr.mxu0 0.0
    %237 = vmatpush1.msra.mxu0 0.0
    %238 = vmatprep.subr.mxu0 0.0
    %239 = vmatpush1.msra.mxu0 0.0
    %240 = vmatprep.subr.mxu0 0.0
    %241 = vmatpush1.msra.mxu0 0.0
    %242 = vmatprep.subr.mxu0 0.0
    %243 = vmatpush1.msra.mxu0 0.0
    %244 = vmatprep.subr.mxu0 0.0
    %245 = vmatpush1.msra.mxu0 0.0
    %246 = vmatprep.mubr.f32.mxu0 0.0
    %v247 = vand.u32 %v68, 4294901760
    %248 = vmatmul.mubr.f32.gmra.mrb[0].mxu0 %v247
    %v249 = vpop.f32.mrb[0].mxu0
    %v250 = vadd.f32 %v149, %v249
    %v251 = vpop.f32.mrb[0].mxu0
    %252 = vmatprep.mubr.f32.mxu0 0.0
    %v253 = vand.u32 %v71, 4294901760
    %254 = vmatmul.mubr.f32.gmra.mrb[0].mxu0 %v253
    %v255 = vpop.f32.mrb[0].mxu0
    %v256 = vadd.f32 %v159, %v255
    %v257 = vpop.f32.mrb[0].mxu0
    %258 = vdwg.mxu0
    %259 = vmatprep.subr.mxu0 0.0
    %v260 = vand.u32 %v55, 4294901760
    %v261 = vsub.f32 %v55, %v260
    %262 = vmatpush1.msra.mxu0 %v261
    %263 = vmatprep.subr.mxu0 0.0
    %v264 = vand.u32 %v56, 4294901760
    %v265 = vsub.f32 %v56, %v264
    %266 = vmatpush1.msra.mxu0 %v265
    %267 = vmatprep.subr.mxu0 0.0
    %v268 = vand.u32 %v57, 4294901760
    %v269 = vsub.f32 %v57, %v268
    %270 = vmatpush1.msra.mxu0 %v269
    %271 = vmatprep.subr.mxu0 0.0
    %v272 = vand.u32 %v58, 4294901760
    %v273 = vsub.f32 %v58, %v272
    %274 = vmatpush1.msra.mxu0 %v273
    %275 = vmatprep.subr.mxu0 0.0
    %276 = vmatpush1.msra.mxu0 0.0
    %277 = vmatprep.subr.mxu0 0.0
    %278 = vmatpush1.msra.mxu0 0.0
    %279 = vmatprep.subr.mxu0 0.0
    %280 = vmatpush1.msra.mxu0 0.0
    %281 = vmatprep.subr.mxu0 0.0
    %282 = vmatpush1.msra.mxu0 0.0
    %283 = vmatprep.subr.mxu0 0.0
    %284 = vmatpush1.msra.mxu0 0.0
    %285 = vmatprep.subr.mxu0 0.0
    %286 = vmatpush1.msra.mxu0 0.0
    %287 = vmatprep.subr.mxu0 0.0
    %288 = vmatpush1.msra.mxu0 0.0
    %289 = vmatprep.subr.mxu0 0.0
    %290 = vmatpush1.msra.mxu0 0.0
    %291 = vmatprep.subr.mxu0 0.0
    %292 = vmatpush1.msra.mxu0 0.0
    %293 = vmatprep.subr.mxu0 0.0
    %294 = vmatpush1.msra.mxu0 0.0
    %295 = vmatprep.subr.mxu0 0.0
    %296 = vmatpush1.msra.mxu0 0.0
    %297 = vmatprep.subr.mxu0 0.0
    %298 = vmatpush1.msra.mxu0 0.0
    %299 = vmatprep.subr.mxu0 0.0
    %300 = vmatpush1.msra.mxu0 0.0
    %301 = vmatprep.subr.mxu0 0.0
    %302 = vmatpush1.msra.mxu0 0.0
    %303 = vmatprep.subr.mxu0 0.0
    %304 = vmatpush1.msra.mxu0 0.0
    %305 = vmatprep.subr.mxu0 0.0
    %306 = vmatpush1.msra.mxu0 0.0
    %307 = vmatprep.subr.mxu0 0.0
    %308 = vmatpush1.msra.mxu0 0.0
    %309 = vmatprep.subr.mxu0 0.0
    %310 = vmatpush1.msra.mxu0 0.0
    %311 = vmatprep.subr.mxu0 0.0
    %312 = vmatpush1.msra.mxu0 0.0
    %313 = vmatprep.subr.mxu0 0.0
    %314 = vmatpush1.msra.mxu0 0.0
    %315 = vmatprep.subr.mxu0 0.0
    %316 = vmatpush1.msra.mxu0 0.0
    %317 = vmatprep.subr.mxu0 0.0
    %318 = vmatpush1.msra.mxu0 0.0
    %319 = vmatprep.subr.mxu0 0.0
    %320 = vmatpush1.msra.mxu0 0.0
    %321 = vmatprep.subr.mxu0 0.0
    %322 = vmatpush1.msra.mxu0 0.0
    %323 = vmatprep.subr.mxu0 0.0
    %324 = vmatpush1.msra.mxu0 0.0
    %325 = vmatprep.subr.mxu0 0.0
    %326 = vmatpush1.msra.mxu0 0.0
    %327 = vmatprep.subr.mxu0 0.0
    %328 = vmatpush1.msra.mxu0 0.0
    %329 = vmatprep.subr.mxu0 0.0
    %330 = vmatpush1.msra.mxu0 0.0
    %331 = vmatprep.mubr.f32.mxu0 0.0
    %v332 = vand.u32 %v68, 4294901760
    %v333 = vsub.f32 %v68, %v332
    %334 = vmatmul.mubr.f32.gmra.mrb[0].mxu0 %v333
    %v335 = vpop.f32.mrb[0].mxu0
    %v336 = vadd.f32 %v250, %v335
    %v337 = vpop.f32.mrb[0].mxu0
    %338 = vmatprep.mubr.f32.mxu0 0.0
    %v339 = vand.u32 %v71, 4294901760
    %v340 = vsub.f32 %v71, %v339
    %341 = vmatmul.mubr.f32.gmra.mrb[0].mxu0 %v340
    %v342 = vpop.f32.mrb[0].mxu0
    %v343 = vadd.f32 %v256, %v342
    %v344 = vpop.f32.mrb[0].mxu0
    %345 = vdwg.mxu0
    %346 = vmatprep.subr.mxu0 0.0
    %v347 = vand.u32 %v55, 4294901760
    %348 = vmatpush1.msra.mxu0 %v347
    %349 = vmatprep.subr.mxu0 0.0
    %v350 = vand.u32 %v56, 4294901760
    %351 = vmatpush1.msra.mxu0 %v350
    %352 = vmatprep.subr.mxu0 0.0
    %v353 = vand.u32 %v57, 4294901760
    %354 = vmatpush1.msra.mxu0 %v353
    %355 = vmatprep.subr.mxu0 0.0
    %v356 = vand.u32 %v58, 4294901760
    %357 = vmatpush1.msra.mxu0 %v356
    %358 = vmatprep.subr.mxu0 0.0
    %359 = vmatpush1.msra.mxu0 0.0
    %360 = vmatprep.subr.mxu0 0.0
    %361 = vmatpush1.msra.mxu0 0.0
    %362 = vmatprep.subr.mxu0 0.0
    %363 = vmatpush1.msra.mxu0 0.0
    %364 = vmatprep.subr.mxu0 0.0
    %365 = vmatpush1.msra.mxu0 0.0
    %366 = vmatprep.subr.mxu0 0.0
    %367 = vmatpush1.msra.mxu0 0.0
    %368 = vmatprep.subr.mxu0 0.0
    %369 = vmatpush1.msra.mxu0 0.0
    %370 = vmatprep.subr.mxu0 0.0
    %371 = vmatpush1.msra.mxu0 0.0
    %372 = vmatprep.subr.mxu0 0.0
    %373 = vmatpush1.msra.mxu0 0.0
    %374 = vmatprep.subr.mxu0 0.0
    %375 = vmatpush1.msra.mxu0 0.0
    %376 = vmatprep.subr.mxu0 0.0
    %377 = vmatpush1.msra.mxu0 0.0
    %378 = vmatprep.subr.mxu0 0.0
    %379 = vmatpush1.msra.mxu0 0.0
    %380 = vmatprep.subr.mxu0 0.0
    %381 = vmatpush1.msra.mxu0 0.0
    %382 = vmatprep.subr.mxu0 0.0
    %383 = vmatpush1.msra.mxu0 0.0
    %384 = vmatprep.subr.mxu0 0.0
    %385 = vmatpush1.msra.mxu0 0.0
    %386 = vmatprep.subr.mxu0 0.0
    %387 = vmatpush1.msra.mxu0 0.0
    %388 = vmatprep.subr.mxu0 0.0
    %389 = vmatpush1.msra.mxu0 0.0
    %390 = vmatprep.subr.mxu0 0.0
    %391 = vmatpush1.msra.mxu0 0.0
    %392 = vmatprep.subr.mxu0 0.0
    %393 = vmatpush1.msra.mxu0 0.0
    %394 = vmatprep.subr.mxu0 0.0
    %395 = vmatpush1.msra.mxu0 0.0
    %396 = vmatprep.subr.mxu0 0.0
    %397 = vmatpush1.msra.mxu0 0.0
    %398 = vmatprep.subr.mxu0 0.0
    %399 = vmatpush1.msra.mxu0 0.0
    %400 = vmatprep.subr.mxu0 0.0
    %401 = vmatpush1.msra.mxu0 0.0
    %402 = vmatprep.subr.mxu0 0.0
    %403 = vmatpush1.msra.mxu0 0.0
    %404 = vmatprep.subr.mxu0 0.0
    %405 = vmatpush1.msra.mxu0 0.0
    %406 = vmatprep.subr.mxu0 0.0
    %407 = vmatpush1.msra.mxu0 0.0
    %408 = vmatprep.subr.mxu0 0.0
    %409 = vmatpush1.msra.mxu0 0.0
    %410 = vmatprep.subr.mxu0 0.0
    %411 = vmatpush1.msra.mxu0 0.0
    %412 = vmatprep.subr.mxu0 0.0
    %413 = vmatpush1.msra.mxu0 0.0
    %414 = vmatprep.mubr.f32.mxu0 0.0
    %v415 = vand.u32 %v68, 4294901760
    %v416 = vsub.f32 %v68, %v415
    %v417 = vand.u32 %v416, 4294901760
    %418 = vmatmul.mubr.f32.gmra.mrb[0].mxu0 %v417
    %v419 = vpop.f32.mrb[0].mxu0
    %v420 = vadd.f32 %v336, %v419
    %v421 = vpop.f32.mrb[0].mxu0
    %422 = vmatprep.mubr.f32.mxu0 0.0
    %v423 = vand.u32 %v71, 4294901760
    %v424 = vsub.f32 %v71, %v423
    %v425 = vand.u32 %v424, 4294901760
    %426 = vmatmul.mubr.f32.gmra.mrb[0].mxu0 %v425
    %v427 = vpop.f32.mrb[0].mxu0
    %v428 = vadd.f32 %v343, %v427
    %v429 = vpop.f32.mrb[0].mxu0
    %430 = vdwg.mxu0
    %431 = vmatprep.subr.mxu0 0.0
    %v432 = vand.u32 %v55, 4294901760
    %v433 = vsub.f32 %v55, %v432
    %v434 = vand.u32 %v433, 4294901760
    %435 = vmatpush1.msra.mxu0 %v434
    %436 = vmatprep.subr.mxu0 0.0
    %v437 = vand.u32 %v56, 4294901760
    %v438 = vsub.f32 %v56, %v437
    %v439 = vand.u32 %v438, 4294901760
    %440 = vmatpush1.msra.mxu0 %v439
    %441 = vmatprep.subr.mxu0 0.0
    %v442 = vand.u32 %v57, 4294901760
    %v443 = vsub.f32 %v57, %v442
    %v444 = vand.u32 %v443, 4294901760
    %445 = vmatpush1.msra.mxu0 %v444
    %446 = vmatprep.subr.mxu0 0.0
    %v447 = vand.u32 %v58, 4294901760
    %v448 = vsub.f32 %v58, %v447
    %v449 = vand.u32 %v448, 4294901760
    %450 = vmatpush1.msra.mxu0 %v449
    %451 = vmatprep.subr.mxu0 0.0
    %452 = vmatpush1.msra.mxu0 0.0
    %453 = vmatprep.subr.mxu0 0.0
    %454 = vmatpush1.msra.mxu0 0.0
    %455 = vmatprep.subr.mxu0 0.0
    %456 = vmatpush1.msra.mxu0 0.0
    %457 = vmatprep.subr.mxu0 0.0
    %458 = vmatpush1.msra.mxu0 0.0
    %459 = vmatprep.subr.mxu0 0.0
    %460 = vmatpush1.msra.mxu0 0.0
    %461 = vmatprep.subr.mxu0 0.0
    %462 = vmatpush1.msra.mxu0 0.0
    %463 = vmatprep.subr.mxu0 0.0
    %464 = vmatpush1.msra.mxu0 0.0
    %465 = vmatprep.subr.mxu0 0.0
    %466 = vmatpush1.msra.mxu0 0.0
    %467 = vmatprep.subr.mxu0 0.0
    %468 = vmatpush1.msra.mxu0 0.0
    %469 = vmatprep.subr.mxu0 0.0
    %470 = vmatpush1.msra.mxu0 0.0
    %471 = vmatprep.subr.mxu0 0.0
    %472 = vmatpush1.msra.mxu0 0.0
    %473 = vmatprep.subr.mxu0 0.0
    %474 = vmatpush1.msra.mxu0 0.0
    %475 = vmatprep.subr.mxu0 0.0
    %476 = vmatpush1.msra.mxu0 0.0
    %477 = vmatprep.subr.mxu0 0.0
    %478 = vmatpush1.msra.mxu0 0.0
    %479 = vmatprep.subr.mxu0 0.0
    %480 = vmatpush1.msra.mxu0 0.0
    %481 = vmatprep.subr.mxu0 0.0
    %482 = vmatpush1.msra.mxu0 0.0
    %483 = vmatprep.subr.mxu0 0.0
    %484 = vmatpush1.msra.mxu0 0.0
    %485 = vmatprep.subr.mxu0 0.0
    %486 = vmatpush1.msra.mxu0 0.0
    %487 = vmatprep.subr.mxu0 0.0
    %488 = vmatpush1.msra.mxu0 0.0
    %489 = vmatprep.subr.mxu0 0.0
    %490 = vmatpush1.msra.mxu0 0.0
    %491 = vmatprep.subr.mxu0 0.0
    %492 = vmatpush1.msra.mxu0 0.0
    %493 = vmatprep.subr.mxu0 0.0
    %494 = vmatpush1.msra.mxu0 0.0
    %495 = vmatprep.subr.mxu0 0.0
    %496 = vmatpush1.msra.mxu0 0.0
    %497 = vmatprep.subr.mxu0 0.0
    %498 = vmatpush1.msra.mxu0 0.0
    %499 = vmatprep.subr.mxu0 0.0
    %500 = vmatpush1.msra.mxu0 0.0
    %501 = vmatprep.subr.mxu0 0.0
    %502 = vmatpush1.msra.mxu0 0.0
    %503 = vmatprep.subr.mxu0 0.0
    %504 = vmatpush1.msra.mxu0 0.0
    %505 = vmatprep.subr.mxu0 0.0
    %506 = vmatpush1.msra.mxu0 0.0
    %507 = vmatprep.mubr.f32.mxu0 0.0
    %v508 = vand.u32 %v68, 4294901760
    %509 = vmatmul.mubr.f32.gmra.mrb[0].mxu0 %v508
    %v510 = vpop.f32.mrb[0].mxu0
    %v511 = vadd.f32 %v420, %v510
    %v512 = vpop.f32.mrb[0].mxu0
    %513 = vmatprep.mubr.f32.mxu0 0.0
    %v514 = vand.u32 %v71, 4294901760
    %515 = vmatmul.mubr.f32.gmra.mrb[0].mxu0 %v514
    %v516 = vpop.f32.mrb[0].mxu0
    %v517 = vadd.f32 %v428, %v516
    %v518 = vpop.f32.mrb[0].mxu0
    %519 = vdwg.mxu0
    %520 = vmatprep.subr.mxu0 0.0
    %v521 = vand.u32 %v55, 4294901760
    %522 = vmatpush1.msra.mxu0 %v521
    %523 = vmatprep.subr.mxu0 0.0
    %v524 = vand.u32 %v56, 4294901760
    %525 = vmatpush1.msra.mxu0 %v524
    %526 = vmatprep.subr.mxu0 0.0
    %v527 = vand.u32 %v57, 4294901760
    %528 = vmatpush1.msra.mxu0 %v527
    %529 = vmatprep.subr.mxu0 0.0
    %v530 = vand.u32 %v58, 4294901760
    %531 = vmatpush1.msra.mxu0 %v530
    %532 = vmatprep.subr.mxu0 0.0
    %533 = vmatpush1.msra.mxu0 0.0
    %534 = vmatprep.subr.mxu0 0.0
    %535 = vmatpush1.msra.mxu0 0.0
    %536 = vmatprep.subr.mxu0 0.0
    %537 = vmatpush1.msra.mxu0 0.0
    %538 = vmatprep.subr.mxu0 0.0
    %539 = vmatpush1.msra.mxu0 0.0
    %540 = vmatprep.subr.mxu0 0.0
    %541 = vmatpush1.msra.mxu0 0.0
    %542 = vmatprep.subr.mxu0 0.0
    %543 = vmatpush1.msra.mxu0 0.0
    %544 = vmatprep.subr.mxu0 0.0
    %545 = vmatpush1.msra.mxu0 0.0
    %546 = vmatprep.subr.mxu0 0.0
    %547 = vmatpush1.msra.mxu0 0.0
    %548 = vmatprep.subr.mxu0 0.0
    %549 = vmatpush1.msra.mxu0 0.0
    %550 = vmatprep.subr.mxu0 0.0
    %551 = vmatpush1.msra.mxu0 0.0
    %552 = vmatprep.subr.mxu0 0.0
    %553 = vmatpush1.msra.mxu0 0.0
    %554 = vmatprep.subr.mxu0 0.0
    %555 = vmatpush1.msra.mxu0 0.0
    %556 = vmatprep.subr.mxu0 0.0
    %557 = vmatpush1.msra.mxu0 0.0
    %558 = vmatprep.subr.mxu0 0.0
    %559 = vmatpush1.msra.mxu0 0.0
    %560 = vmatprep.subr.mxu0 0.0
    %561 = vmatpush1.msra.mxu0 0.0
    %562 = vmatprep.subr.mxu0 0.0
    %563 = vmatpush1.msra.mxu0 0.0
    %564 = vmatprep.subr.mxu0 0.0
    %565 = vmatpush1.msra.mxu0 0.0
    %566 = vmatprep.subr.mxu0 0.0
    %567 = vmatpush1.msra.mxu0 0.0
    %568 = vmatprep.subr.mxu0 0.0
    %569 = vmatpush1.msra.mxu0 0.0
    %570 = vmatprep.subr.mxu0 0.0
    %571 = vmatpush1.msra.mxu0 0.0
    %572 = vmatprep.subr.mxu0 0.0
    %573 = vmatpush1.msra.mxu0 0.0
    %574 = vmatprep.subr.mxu0 0.0
    %575 = vmatpush1.msra.mxu0 0.0
    %576 = vmatprep.subr.mxu0 0.0
    %577 = vmatpush1.msra.mxu0 0.0
    %578 = vmatprep.subr.mxu0 0.0
    %579 = vmatpush1.msra.mxu0 0.0
    %580 = vmatprep.subr.mxu0 0.0
    %581 = vmatpush1.msra.mxu0 0.0
    %582 = vmatprep.subr.mxu0 0.0
    %583 = vmatpush1.msra.mxu0 0.0
    %584 = vmatprep.subr.mxu0 0.0
    %585 = vmatpush1.msra.mxu0 0.0
    %586 = vmatprep.subr.mxu0 0.0
    %587 = vmatpush1.msra.mxu0 0.0
    %588 = vmatprep.mubr.f32.mxu0 0.0
    %v589 = vand.u32 %v68, 4294901760
    %590 = vmatmul.mubr.f32.gmra.mrb[0].mxu0 %v589
    %v591 = vpop.f32.mrb[0].mxu0
    %v592 = vadd.f32 %v511, %v591
    %v593 = vpop.f32.mrb[0].mxu0
    %594 = vmatprep.mubr.f32.mxu0 0.0
    %v595 = vand.u32 %v71, 4294901760
    %596 = vmatmul.mubr.f32.gmra.mrb[0].mxu0 %v595
    %v597 = vpop.f32.mrb[0].mxu0
    %v598 = vadd.f32 %v517, %v597
    %v599 = vpop.f32.mrb[0].mxu0
    %600 = vdwg.mxu0
    %v601 = vtanh.pop %v592
    %v602 = vtanh.pop %v598
    %v603 = vmax.f32 %v592, 0.0
    %v604 = vmax.f32 %v598, 0.0
    %v605 = vand.u32 2147483647, %v592
    %v606 = vand.u32 2147483647, %v598
    %v607 = vsub.f32 0.0, %v605
    %v608 = vsub.f32 0.0, %v606
    %v609 = vmul.f32 %v607, 1.442695
    %v610 = vpow.pop %v609
    %v611 = vmul.f32 %v608, 1.442695
    %v612 = vpow.pop %v611
    %v613 = vadd.f32 %v610, 1.0
    %v614 = vadd.f32 %v612, 1.0
    %v615 = vlog2.pop %v613
    %v616 = vmul.f32 %v615, 0.6931472
    %v617 = vlog2.pop %v614
    %v618 = vmul.f32 %v617, 0.6931472
    %v619 = vadd.f32 %v603, %v616
    %v620 = vadd.f32 %v604, %v618
    %v621 = vsub.f32 0.0, %v592
    %v622 = vsub.f32 0.0, %v598
    %v623 = vmul.f32 %v621, 1.442695
    %v624 = vpow.pop %v623
    %v625 = vmul.f32 %v622, 1.442695
    %v626 = vpow.pop %v625
    %v627 = vadd.f32 %v624, 1.0
    %v628 = vadd.f32 %v626, 1.0
    %v629 = vrcp.pop %v627
    %v630 = vmul.f32 1.0, %v629
    %v631 = vrcp.pop %v628
    %v632 = vmul.f32 1.0, %v631
    %vm633 = vcmask 105552
    %v634 = vsel %vm633, %v592, -inf
    %635 = vmax.xlane.f32.xlu0 %v634
    %v636 = vpop.xlane.xlu0 %635
    %v637 = vsel %vm633, %v598, -inf
    %638 = vmax.xlane.f32.xlu0 %v637
    %v639 = vpop.xlane.xlu0 %638
    %v640 = vsub.f32 %v592, %v636
    %v641 = vsub.f32 %v598, %v639
    %v642 = vmul.f32 %v640, 1.442695
    %v643 = vpow.pop %v642
    %v644 = vmul.f32 %v641, 1.442695
    %v645 = vpow.pop %v644
    %648 = vrot.lane.b32.xlu0 %v643, 118
    %v649 = vpop.permute.xlu0 %648
    %650 = vrot.lane.b32.xlu0 %v645, 118
    %v651 = vpop.permute.xlu0 %650
    %vm654 = vcmask 23552
    %v655 = vsel %vm654, %v649, 0.0
    %656 = vadd.xlane.f32.xlu0 %v655
    %v657 = vpop.xlane.xlu0 %656
    %v658 = vsel %vm654, %v651, 0.0
    %659 = vadd.xlane.f32.xlu0 %v658
    %v660 = vpop.xlane.xlu0 %659
    %v661 = vrcp.pop %v657
    %v662 = vmul.f32 %v643, %v661
    %v663 = vrcp.pop %v660
    %v664 = vmul.f32 %v645, %v663
    %v665 = vadd.f32 %v619, 1.0
    %v666 = vadd.f32 %v620, 1.0
    %v667 = vadd.f32 %v601, 1e-16
    %v668 = vadd.f32 %v602, 1e-16
    %v669 = vadd.f32 %v21, 1e-16
    %v670 = vadd.f32 %v22, 1e-16
    %v671 = vadd.f32 %v23, 1e-16
    %v672 = vadd.f32 %v24, 1e-16
    %v673 = vadd.f32 %v25, 1e-16
    %v674 = vadd.f32 %v26, 1e-16
    %v675 = vadd.f32 %v27, 1e-16
    %v676 = vadd.f32 %v28, 1e-16
    %v677 = vadd.f32 %v29, 1e-16
    %v678 = vadd.f32 %v30, 1e-16
    %v679 = vadd.f32 %v31, 1e-16
    %v680 = vadd.f32 %v32, 1e-16
    %v681 = vadd.f32 %v33, 1e-16
    %v682 = vadd.f32 %v34, 1e-16
    %v683 = vadd.f32 %v35, 1e-16
    %v684 = vadd.f32 %v36, 1e-16
    %v685 = vadd.f32 %v37, 1e-16
    %v686 = vadd.f32 %v38, 1e-16
    %v687 = vadd.f32 %v39, 1e-16
    %v688 = vadd.f32 %v40, 1e-16
    %v689 = vadd.f32 %v41, 1e-16
    %v690 = vadd.f32 %v42, 1e-16
    %v691 = vadd.f32 %v43, 1e-16
    %v692 = vadd.f32 %v44, 1e-16
    %v693 = vadd.f32 %v45, 1e-16
    %v694 = vadd.f32 %v46, 1e-16
    %v695 = vadd.f32 %v47, 1e-16
    %v696 = vadd.f32 %v48, 1e-16
    %v697 = vadd.f32 %v49, 1e-16
    %v698 = vadd.f32 %v50, 1e-16
    %v699 = vadd.f32 %v51, 1e-16
    %v700 = vadd.f32 %v52, 1e-16
    %v703 = vcombine.high %v667, %v667
    %v705 = vunpack.c.l.s4 1966171168
    %v706 = vunpack.c.0.s8 %v705
    %v707 = vlaneseq
    %v708 = vshrl.u32 %v707, 7
    %v709 = vsub.s32 %v706, %v708
    %v710 = vrot.slane %v667, %v709
    %v712 = vunpack.c.l.s4 1966171168
    %v713 = vunpack.c.0.s8 %v712
    %v714 = vlaneseq
    %v715 = vshrl.u32 %v714, 7
    %v716 = vsub.s32 %v713, %v715
    %v717 = vrot.slane %v703, %v716
    %v718 = vcombine.high %v710, %v710
    %v719 = vcombine.high %v717, %v717
    %v721 = vunpack.c.l.s4 1966171168
    %v722 = vunpack.c.0.s8 %v721
    %v723 = vlaneseq
    %v724 = vshrl.u32 %v723, 7
    %v725 = vsub.s32 %v722, %v724
    %v726 = vrot.slane %v710, %v725
    %v728 = vunpack.c.l.s4 1966171168
    %v729 = vunpack.c.0.s8 %v728
    %v730 = vlaneseq
    %v731 = vshrl.u32 %v730, 7
    %v732 = vsub.s32 %v729, %v731
    %v733 = vrot.slane %v717, %v732
    %v735 = vunpack.c.l.s4 1966171168
    %v736 = vunpack.c.0.s8 %v735
    %v737 = vlaneseq
    %v738 = vshrl.u32 %v737, 7
    %v739 = vsub.s32 %v736, %v738
    %v740 = vrot.slane %v718, %v739
    %v742 = vunpack.c.l.s4 1966171168
    %v743 = vunpack.c.0.s8 %v742
    %v744 = vlaneseq
    %v745 = vshrl.u32 %v744, 7
    %v746 = vsub.s32 %v743, %v745
    %v747 = vrot.slane %v719, %v746
    %v748 = vcombine.high %v726, %v726
    %v749 = vcombine.high %v733, %v733
    %v750 = vcombine.high %v740, %v740
    %v751 = vcombine.high %v747, %v747
    %v752 = vcombine.high %v668, %v668
    %v754 = vunpack.c.l.s4 1966171168
    %v755 = vunpack.c.0.s8 %v754
    %v756 = vlaneseq
    %v757 = vshrl.u32 %v756, 7
    %v758 = vsub.s32 %v755, %v757
    %v759 = vrot.slane %v668, %v758
    %v761 = vunpack.c.l.s4 1966171168
    %v762 = vunpack.c.0.s8 %v761
    %v763 = vlaneseq
    %v764 = vshrl.u32 %v763, 7
    %v765 = vsub.s32 %v762, %v764
    %v766 = vrot.slane %v752, %v765
    %v767 = vcombine.high %v759, %v759
    %v768 = vcombine.high %v766, %v766
    %v770 = vunpack.c.l.s4 1966171168
    %v771 = vunpack.c.0.s8 %v770
    %v772 = vlaneseq
    %v773 = vshrl.u32 %v772, 7
    %v774 = vsub.s32 %v771, %v773
    %v775 = vrot.slane %v759, %v774
    %v777 = vunpack.c.l.s4 1966171168
    %v778 = vunpack.c.0.s8 %v777
    %v779 = vlaneseq
    %v780 = vshrl.u32 %v779, 7
    %v781 = vsub.s32 %v778, %v780
    %v782 = vrot.slane %v766, %v781
    %v784 = vunpack.c.l.s4 1966171168
    %v785 = vunpack.c.0.s8 %v784
    %v786 = vlaneseq
    %v787 = vshrl.u32 %v786, 7
    %v788 = vsub.s32 %v785, %v787
    %v789 = vrot.slane %v767, %v788
    %v791 = vunpack.c.l.s4 1966171168
    %v792 = vunpack.c.0.s8 %v791
    %v793 = vlaneseq
    %v794 = vshrl.u32 %v793, 7
    %v795 = vsub.s32 %v792, %v794
    %v796 = vrot.slane %v768, %v795
    %v797 = vcombine.high %v775, %v775
    %v798 = vcombine.high %v782, %v782
    %v799 = vcombine.high %v789, %v789
    %v800 = vcombine.high %v796, %v796
    %v801 = vlaneseq
    %v802 = vshrl.u32 %v801, 7
    %v803 = vsub.s32 0, %v802
    %v804 = vrot.slane %v726, %v803
    %v805 = vlaneseq
    %v806 = vshrl.u32 %v805, 7
    %v807 = vsub.s32 0, %v806
    %v808 = vrot.slane %v740, %v807
    %v809 = vlaneseq
    %v810 = vshrl.u32 %v809, 7
    %v811 = vsub.s32 0, %v810
    %v812 = vrot.slane %v748, %v811
    %v813 = vlaneseq
    %v814 = vshrl.u32 %v813, 7
    %v815 = vsub.s32 0, %v814
    %v816 = vrot.slane %v750, %v815
    %v817 = vlaneseq
    %v818 = vshrl.u32 %v817, 7
    %v819 = vsub.s32 0, %v818
    %v820 = vrot.slane %v733, %v819
    %v821 = vlaneseq
    %v822 = vshrl.u32 %v821, 7
    %v823 = vsub.s32 0, %v822
    %v824 = vrot.slane %v747, %v823
    %v825 = vlaneseq
    %v826 = vshrl.u32 %v825, 7
    %v827 = vsub.s32 0, %v826
    %v828 = vrot.slane %v749, %v827
    %v829 = vlaneseq
    %v830 = vshrl.u32 %v829, 7
    %v831 = vsub.s32 0, %v830
    %v832 = vrot.slane %v751, %v831
    %v833 = vlaneseq
    %v834 = vshrl.u32 %v833, 7
    %v835 = vsub.s32 0, %v834
    %v836 = vrot.slane %v775, %v835
    %v837 = vlaneseq
    %v838 = vshrl.u32 %v837, 7
    %v839 = vsub.s32 0, %v838
    %v840 = vrot.slane %v789, %v839
    %v841 = vlaneseq
    %v842 = vshrl.u32 %v841, 7
    %v843 = vsub.s32 0, %v842
    %v844 = vrot.slane %v797, %v843
    %v845 = vlaneseq
    %v846 = vshrl.u32 %v845, 7
    %v847 = vsub.s32 0, %v846
    %v848 = vrot.slane %v799, %v847
    %v849 = vlaneseq
    %v850 = vshrl.u32 %v849, 7
    %v851 = vsub.s32 0, %v850
    %v852 = vrot.slane %v782, %v851
    %v853 = vlaneseq
    %v854 = vshrl.u32 %v853, 7
    %v855 = vsub.s32 0, %v854
    %v856 = vrot.slane %v796, %v855
    %v857 = vlaneseq
    %v858 = vshrl.u32 %v857, 7
    %v859 = vsub.s32 0, %v858
    %v860 = vrot.slane %v798, %v859
    %v861 = vlaneseq
    %v862 = vshrl.u32 %v861, 7
    %v863 = vsub.s32 0, %v862
    %v864 = vrot.slane %v800, %v863
    %v881 = vmul.f32 %v669, %v804
    %v882 = vmul.f32 %v670, %v804
    %v883 = vmul.f32 %v671, %v808
    %v884 = vmul.f32 %v672, %v808
    %v885 = vmul.f32 %v673, %v812
    %v886 = vmul.f32 %v674, %v812
    %v887 = vmul.f32 %v675, %v816
    %v888 = vmul.f32 %v676, %v816
    %v889 = vmul.f32 %v677, %v820
    %v890 = vmul.f32 %v678, %v820
    %v891 = vmul.f32 %v679, %v824
    %v892 = vmul.f32 %v680, %v824
    %v893 = vmul.f32 %v681, %v828
    %v894 = vmul.f32 %v682, %v828
    %v895 = vmul.f32 %v683, %v832
    %v896 = vmul.f32 %v684, %v832
    %v897 = vmul.f32 %v685, %v836
    %v898 = vmul.f32 %v686, %v836
    %v899 = vmul.f32 %v687, %v840
    %v900 = vmul.f32 %v688, %v840
    %v901 = vmul.f32 %v689, %v844
    %v902 = vmul.f32 %v690, %v844
    %v903 = vmul.f32 %v691, %v848
    %v904 = vmul.f32 %v692, %v848
    %v905 = vmul.f32 %v693, %v852
    %v906 = vmul.f32 %v694, %v852
    %v907 = vmul.f32 %v695, %v856
    %v908 = vmul.f32 %v696, %v856
    %v909 = vmul.f32 %v697, %v860
    %v910 = vmul.f32 %v698, %v860
    %v911 = vmul.f32 %v699, %v864
    %v912 = vmul.f32 %v700, %v864
    %vm913 = vcmask 64512
    %v914 = vsel %vm913, %v881, 0.0
    %915 = vadd.xlane.f32.xlu0 %v914
    %v916 = vpop.xlane.xlu0 %915
    %v917 = vsel %vm913, %v882, 0.0
    %918 = vadd.xlane.f32.xlu0 %v917
    %v919 = vpop.xlane.xlu0 %918
    %v920 = vsel %vm913, %v883, 0.0
    %921 = vadd.xlane.f32.xlu0 %v920
    %v922 = vpop.xlane.xlu0 %921
    %v923 = vsel %vm913, %v884, 0.0
    %924 = vadd.xlane.f32.xlu0 %v923
    %v925 = vpop.xlane.xlu0 %924
    %v926 = vsel %vm913, %v885, 0.0
    %927 = vadd.xlane.f32.xlu0 %v926
    %v928 = vpop.xlane.xlu0 %927
    %v929 = vsel %vm913, %v886, 0.0
    %930 = vadd.xlane.f32.xlu0 %v929
    %v931 = vpop.xlane.xlu0 %930
    %v932 = vsel %vm913, %v887, 0.0
    %933 = vadd.xlane.f32.xlu0 %v932
    %v934 = vpop.xlane.xlu0 %933
    %v935 = vsel %vm913, %v888, 0.0
    %936 = vadd.xlane.f32.xlu0 %v935
    %v937 = vpop.xlane.xlu0 %936
    %v938 = vsel %vm913, %v889, 0.0
    %939 = vadd.xlane.f32.xlu0 %v938
    %v940 = vpop.xlane.xlu0 %939
    %v941 = vsel %vm913, %v890, 0.0
    %942 = vadd.xlane.f32.xlu0 %v941
    %v943 = vpop.xlane.xlu0 %942
    %v944 = vsel %vm913, %v891, 0.0
    %945 = vadd.xlane.f32.xlu0 %v944
    %v946 = vpop.xlane.xlu0 %945
    %v947 = vsel %vm913, %v892, 0.0
    %948 = vadd.xlane.f32.xlu0 %v947
    %v949 = vpop.xlane.xlu0 %948
    %v950 = vsel %vm913, %v893, 0.0
    %951 = vadd.xlane.f32.xlu0 %v950
    %v952 = vpop.xlane.xlu0 %951
    %v953 = vsel %vm913, %v894, 0.0
    %954 = vadd.xlane.f32.xlu0 %v953
    %v955 = vpop.xlane.xlu0 %954
    %v956 = vsel %vm913, %v895, 0.0
    %957 = vadd.xlane.f32.xlu0 %v956
    %v958 = vpop.xlane.xlu0 %957
    %v959 = vsel %vm913, %v896, 0.0
    %960 = vadd.xlane.f32.xlu0 %v959
    %v961 = vpop.xlane.xlu0 %960
    %v962 = vsel %vm913, %v897, 0.0
    %963 = vadd.xlane.f32.xlu0 %v962
    %v964 = vpop.xlane.xlu0 %963
    %v965 = vsel %vm913, %v898, 0.0
    %966 = vadd.xlane.f32.xlu0 %v965
    %v967 = vpop.xlane.xlu0 %966
    %v968 = vsel %vm913, %v899, 0.0
    %969 = vadd.xlane.f32.xlu0 %v968
    %v970 = vpop.xlane.xlu0 %969
    %v971 = vsel %vm913, %v900, 0.0
    %972 = vadd.xlane.f32.xlu0 %v971
    %v973 = vpop.xlane.xlu0 %972
    %v974 = vsel %vm913, %v901, 0.0
    %975 = vadd.xlane.f32.xlu0 %v974
    %v976 = vpop.xlane.xlu0 %975
    %v977 = vsel %vm913, %v902, 0.0
    %978 = vadd.xlane.f32.xlu0 %v977
    %v979 = vpop.xlane.xlu0 %978
    %v980 = vsel %vm913, %v903, 0.0
    %981 = vadd.xlane.f32.xlu0 %v980
    %v982 = vpop.xlane.xlu0 %981
    %v983 = vsel %vm913, %v904, 0.0
    %984 = vadd.xlane.f32.xlu0 %v983
    %v985 = vpop.xlane.xlu0 %984
    %v986 = vsel %vm913, %v905, 0.0
    %987 = vadd.xlane.f32.xlu0 %v986
    %v988 = vpop.xlane.xlu0 %987
    %v989 = vsel %vm913, %v906, 0.0
    %990 = vadd.xlane.f32.xlu0 %v989
    %v991 = vpop.xlane.xlu0 %990
    %v992 = vsel %vm913, %v907, 0.0
    %993 = vadd.xlane.f32.xlu0 %v992
    %v994 = vpop.xlane.xlu0 %993
    %v995 = vsel %vm913, %v908, 0.0
    %996 = vadd.xlane.f32.xlu0 %v995
    %v997 = vpop.xlane.xlu0 %996
    %v998 = vsel %vm913, %v909, 0.0
    %999 = vadd.xlane.f32.xlu0 %v998
    %v1000 = vpop.xlane.xlu0 %999
    %v1001 = vsel %vm913, %v910, 0.0
    %1002 = vadd.xlane.f32.xlu0 %v1001
    %v1003 = vpop.xlane.xlu0 %1002
    %v1004 = vsel %vm913, %v911, 0.0
    %1005 = vadd.xlane.f32.xlu0 %v1004
    %v1006 = vpop.xlane.xlu0 %1005
    %v1007 = vsel %vm913, %v912, 0.0
    %1008 = vadd.xlane.f32.xlu0 %v1007
    %v1009 = vpop.xlane.xlu0 %1008
    %v1010 = vmul.f32 %v667, %v667
    %v1011 = vmul.f32 %v668, %v668
    %v1012 = vsel %vm913, %v1010, 0.0
    %1013 = vadd.xlane.f32.xlu0 %v1012
    %v1014 = vpop.xlane.xlu0 %1013
    %v1015 = vsel %vm913, %v1011, 0.0
    %1016 = vadd.xlane.f32.xlu0 %v1015
    %v1017 = vpop.xlane.xlu0 %1016
    %v1018 = vrsqrt.pop %v1014
    %v1019 = vmul.f32 %v1014, %v1018
    %vm1020 = vcmp.eq.f32.partialorder %v1014, inf
    %v1021 = vsel %vm1020, %v1014, %v1019
    %vm1022 = vcmp.eq.f32.partialorder %v1014, 0.0
    %v1023 = vand.u32 %v1014, 2147483648
    %v1024 = vsel %vm1022, %v1023, %v1021
    %v1025 = vrsqrt.pop %v1017
    %v1026 = vmul.f32 %v1017, %v1025
    %vm1027 = vcmp.eq.f32.partialorder %v1017, inf
    %v1028 = vsel %vm1027, %v1017, %v1026
    %vm1029 = vcmp.eq.f32.partialorder %v1017, 0.0
    %v1030 = vand.u32 %v1017, 2147483648
    %v1031 = vsel %vm1029, %v1030, %v1028
    %v1032 = vmul.f32 %v669, %v669
    %v1033 = vmul.f32 %v670, %v670
    %v1034 = vmul.f32 %v671, %v671
    %v1035 = vmul.f32 %v672, %v672
    %v1036 = vmul.f32 %v673, %v673
    %v1037 = vmul.f32 %v674, %v674
    %v1038 = vmul.f32 %v675, %v675
    %v1039 = vmul.f32 %v676, %v676
    %v1040 = vmul.f32 %v677, %v677
    %v1041 = vmul.f32 %v678, %v678
    %v1042 = vmul.f32 %v679, %v679
    %v1043 = vmul.f32 %v680, %v680
    %v1044 = vmul.f32 %v681, %v681
    %v1045 = vmul.f32 %v682, %v682
    %v1046 = vmul.f32 %v683, %v683
    %v1047 = vmul.f32 %v684, %v684
    %v1048 = vmul.f32 %v685, %v685
    %v1049 = vmul.f32 %v686, %v686
    %v1050 = vmul.f32 %v687, %v687
    %v1051 = vmul.f32 %v688, %v688
    %v1052 = vmul.f32 %v689, %v689
    %v1053 = vmul.f32 %v690, %v690
    %v1054 = vmul.f32 %v691, %v691
    %v1055 = vmul.f32 %v692, %v692
    %v1056 = vmul.f32 %v693, %v693
    %v1057 = vmul.f32 %v694, %v694
    %v1058 = vmul.f32 %v695, %v695
    %v1059 = vmul.f32 %v696, %v696
    %v1060 = vmul.f32 %v697, %v697
    %v1061 = vmul.f32 %v698, %v698
    %v1062 = vmul.f32 %v699, %v699
    %v1063 = vmul.f32 %v700, %v700
    %v1064 = vsel %vm913, %v1032, 0.0
    %1065 = vadd.xlane.f32.xlu0 %v1064
    %v1066 = vpop.xlane.xlu0 %1065
    %v1067 = vsel %vm913, %v1033, 0.0
    %1068 = vadd.xlane.f32.xlu0 %v1067
    %v1069 = vpop.xlane.xlu0 %1068
    %v1070 = vsel %vm913, %v1034, 0.0
    %1071 = vadd.xlane.f32.xlu0 %v1070
    %v1072 = vpop.xlane.xlu0 %1071
    %v1073 = vsel %vm913, %v1035, 0.0
    %1074 = vadd.xlane.f32.xlu0 %v1073
    %v1075 = vpop.xlane.xlu0 %1074
    %v1076 = vsel %vm913, %v1036, 0.0
    %1077 = vadd.xlane.f32.xlu0 %v1076
    %v1078 = vpop.xlane.xlu0 %1077
    %v1079 = vsel %vm913, %v1037, 0.0
    %1080 = vadd.xlane.f32.xlu0 %v1079
    %v1081 = vpop.xlane.xlu0 %1080
    %v1082 = vsel %vm913, %v1038, 0.0
    %1083 = vadd.xlane.f32.xlu0 %v1082
    %v1084 = vpop.xlane.xlu0 %1083
    %v1085 = vsel %vm913, %v1039, 0.0
    %1086 = vadd.xlane.f32.xlu0 %v1085
    %v1087 = vpop.xlane.xlu0 %1086
    %v1088 = vsel %vm913, %v1040, 0.0
    %1089 = vadd.xlane.f32.xlu0 %v1088
    %v1090 = vpop.xlane.xlu0 %1089
    %v1091 = vsel %vm913, %v1041, 0.0
    %1092 = vadd.xlane.f32.xlu0 %v1091
    %v1093 = vpop.xlane.xlu0 %1092
    %v1094 = vsel %vm913, %v1042, 0.0
    %1095 = vadd.xlane.f32.xlu0 %v1094
    %v1096 = vpop.xlane.xlu0 %1095
    %v1097 = vsel %vm913, %v1043, 0.0
    %1098 = vadd.xlane.f32.xlu0 %v1097
    %v1099 = vpop.xlane.xlu0 %1098
    %v1100 = vsel %vm913, %v1044, 0.0
    %1101 = vadd.xlane.f32.xlu0 %v1100
    %v1102 = vpop.xlane.xlu0 %1101
    %v1103 = vsel %vm913, %v1045, 0.0
    %1104 = vadd.xlane.f32.xlu0 %v1103
    %v1105 = vpop.xlane.xlu0 %1104
    %v1106 = vsel %vm913, %v1046, 0.0
    %1107 = vadd.xlane.f32.xlu0 %v1106
    %v1108 = vpop.xlane.xlu0 %1107
    %v1109 = vsel %vm913, %v1047, 0.0
    %1110 = vadd.xlane.f32.xlu0 %v1109
    %v1111 = vpop.xlane.xlu0 %1110
    %v1112 = vsel %vm913, %v1048, 0.0
    %1113 = vadd.xlane.f32.xlu0 %v1112
    %v1114 = vpop.xlane.xlu0 %1113
    %v1115 = vsel %vm913, %v1049, 0.0
    %1116 = vadd.xlane.f32.xlu0 %v1115
    %v1117 = vpop.xlane.xlu0 %1116
    %v1118 = vsel %vm913, %v1050, 0.0
    %1119 = vadd.xlane.f32.xlu0 %v1118
    %v1120 = vpop.xlane.xlu0 %1119
    %v1121 = vsel %vm913, %v1051, 0.0
    %1122 = vadd.xlane.f32.xlu0 %v1121
    %v1123 = vpop.xlane.xlu0 %1122
    %v1124 = vsel %vm913, %v1052, 0.0
    %1125 = vadd.xlane.f32.xlu0 %v1124
    %v1126 = vpop.xlane.xlu0 %1125
    %v1127 = vsel %vm913, %v1053, 0.0
    %1128 = vadd.xlane.f32.xlu0 %v1127
    %v1129 = vpop.xlane.xlu0 %1128
    %v1130 = vsel %vm913, %v1054, 0.0
    %1131 = vadd.xlane.f32.xlu0 %v1130
    %v1132 = vpop.xlane.xlu0 %1131
    %v1133 = vsel %vm913, %v1055, 0.0
    %1134 = vadd.xlane.f32.xlu0 %v1133
    %v1135 = vpop.xlane.xlu0 %1134
    %v1136 = vsel %vm913, %v1056, 0.0
    %1137 = vadd.xlane.f32.xlu0 %v1136
    %v1138 = vpop.xlane.xlu0 %1137
    %v1139 = vsel %vm913, %v1057, 0.0
    %1140 = vadd.xlane.f32.xlu0 %v1139
    %v1141 = vpop.xlane.xlu0 %1140
    %v1142 = vsel %vm913, %v1058, 0.0
    %1143 = vadd.xlane.f32.xlu0 %v1142
    %v1144 = vpop.xlane.xlu0 %1143
    %v1145 = vsel %vm913, %v1059, 0.0
    %1146 = vadd.xlane.f32.xlu0 %v1145
    %v1147 = vpop.xlane.xlu0 %1146
    %v1148 = vsel %vm913, %v1060, 0.0
    %1149 = vadd.xlane.f32.xlu0 %v1148
    %v1150 = vpop.xlane.xlu0 %1149
    %v1151 = vsel %vm913, %v1061, 0.0
    %1152 = vadd.xlane.f32.xlu0 %v1151
    %v1153 = vpop.xlane.xlu0 %1152
    %v1154 = vsel %vm913, %v1062, 0.0
    %1155 = vadd.xlane.f32.xlu0 %v1154
    %v1156 = vpop.xlane.xlu0 %1155
    %v1157 = vsel %vm913, %v1063, 0.0
    %1158 = vadd.xlane.f32.xlu0 %v1157
    %v1159 = vpop.xlane.xlu0 %1158
    %v1160 = vrsqrt.pop %v1066
    %v1161 = vmul.f32 %v1066, %v1160
    %vm1162 = vcmp.eq.f32.partialorder %v1066, inf
    %v1163 = vsel %vm1162, %v1066, %v1161
    %vm1164 = vcmp.eq.f32.partialorder %v1066, 0.0
    %v1165 = vand.u32 %v1066, 2147483648
    %v1166 = vsel %vm1164, %v1165, %v1163
    %v1167 = vrsqrt.pop %v1069
    %v1168 = vmul.f32 %v1069, %v1167
    %vm1169 = vcmp.eq.f32.partialorder %v1069, inf
    %v1170 = vsel %vm1169, %v1069, %v1168
    %vm1171 = vcmp.eq.f32.partialorder %v1069, 0.0
    %v1172 = vand.u32 %v1069, 2147483648
    %v1173 = vsel %vm1171, %v1172, %v1170
    %v1174 = vrsqrt.pop %v1072
    %v1175 = vmul.f32 %v1072, %v1174
    %vm1176 = vcmp.eq.f32.partialorder %v1072, inf
    %v1177 = vsel %vm1176, %v1072, %v1175
    %vm1178 = vcmp.eq.f32.partialorder %v1072, 0.0
    %v1179 = vand.u32 %v1072, 2147483648
    %v1180 = vsel %vm1178, %v1179, %v1177
    %v1181 = vrsqrt.pop %v1075
    %v1182 = vmul.f32 %v1075, %v1181
    %vm1183 = vcmp.eq.f32.partialorder %v1075, inf
    %v1184 = vsel %vm1183, %v1075, %v1182
    %vm1185 = vcmp.eq.f32.partialorder %v1075, 0.0
    %v1186 = vand.u32 %v1075, 2147483648
    %v1187 = vsel %vm1185, %v1186, %v1184
    %v1188 = vrsqrt.pop %v1078
    %v1189 = vmul.f32 %v1078, %v1188
    %vm1190 = vcmp.eq.f32.partialorder %v1078, inf
    %v1191 = vsel %vm1190, %v1078, %v1189
    %vm1192 = vcmp.eq.f32.partialorder %v1078, 0.0
    %v1193 = vand.u32 %v1078, 2147483648
    %v1194 = vsel %vm1192, %v1193, %v1191
    %v1195 = vrsqrt.pop %v1081
    %v1196 = vmul.f32 %v1081, %v1195
    %vm1197 = vcmp.eq.f32.partialorder %v1081, inf
    %v1198 = vsel %vm1197, %v1081, %v1196
    %vm1199 = vcmp.eq.f32.partialorder %v1081, 0.0
    %v1200 = vand.u32 %v1081, 2147483648
    %v1201 = vsel %vm1199, %v1200, %v1198
    %v1202 = vrsqrt.pop %v1084
    %v1203 = vmul.f32 %v1084, %v1202
    %vm1204 = vcmp.eq.f32.partialorder %v1084, inf
    %v1205 = vsel %vm1204, %v1084, %v1203
    %vm1206 = vcmp.eq.f32.partialorder %v1084, 0.0
    %v1207 = vand.u32 %v1084, 2147483648
    %v1208 = vsel %vm1206, %v1207, %v1205
    %v1209 = vrsqrt.pop %v1087
    %v1210 = vmul.f32 %v1087, %v1209
    %vm1211 = vcmp.eq.f32.partialorder %v1087, inf
    %v1212 = vsel %vm1211, %v1087, %v1210
    %vm1213 = vcmp.eq.f32.partialorder %v1087, 0.0
    %v1214 = vand.u32 %v1087, 2147483648
    %v1215 = vsel %vm1213, %v1214, %v1212
    %v1216 = vrsqrt.pop %v1090
    %v1217 = vmul.f32 %v1090, %v1216
    %vm1218 = vcmp.eq.f32.partialorder %v1090, inf
    %v1219 = vsel %vm1218, %v1090, %v1217
    %vm1220 = vcmp.eq.f32.partialorder %v1090, 0.0
    %v1221 = vand.u32 %v1090, 2147483648
    %v1222 = vsel %vm1220, %v1221, %v1219
    %v1223 = vrsqrt.pop %v1093
    %v1224 = vmul.f32 %v1093, %v1223
    %vm1225 = vcmp.eq.f32.partialorder %v1093, inf
    %v1226 = vsel %vm1225, %v1093, %v1224
    %vm1227 = vcmp.eq.f32.partialorder %v1093, 0.0
    %v1228 = vand.u32 %v1093, 2147483648
    %v1229 = vsel %vm1227, %v1228, %v1226
    %v1230 = vrsqrt.pop %v1096
    %v1231 = vmul.f32 %v1096, %v1230
    %vm1232 = vcmp.eq.f32.partialorder %v1096, inf
    %v1233 = vsel %vm1232, %v1096, %v1231
    %vm1234 = vcmp.eq.f32.partialorder %v1096, 0.0
    %v1235 = vand.u32 %v1096, 2147483648
    %v1236 = vsel %vm1234, %v1235, %v1233
    %v1237 = vrsqrt.pop %v1099
    %v1238 = vmul.f32 %v1099, %v1237
    %vm1239 = vcmp.eq.f32.partialorder %v1099, inf
    %v1240 = vsel %vm1239, %v1099, %v1238
    %vm1241 = vcmp.eq.f32.partialorder %v1099, 0.0
    %v1242 = vand.u32 %v1099, 2147483648
    %v1243 = vsel %vm1241, %v1242, %v1240
    %v1244 = vrsqrt.pop %v1102
    %v1245 = vmul.f32 %v1102, %v1244
    %vm1246 = vcmp.eq.f32.partialorder %v1102, inf
    %v1247 = vsel %vm1246, %v1102, %v1245
    %vm1248 = vcmp.eq.f32.partialorder %v1102, 0.0
    %v1249 = vand.u32 %v1102, 2147483648
    %v1250 = vsel %vm1248, %v1249, %v1247
    %v1251 = vrsqrt.pop %v1105
    %v1252 = vmul.f32 %v1105, %v1251
    %vm1253 = vcmp.eq.f32.partialorder %v1105, inf
    %v1254 = vsel %vm1253, %v1105, %v1252
    %vm1255 = vcmp.eq.f32.partialorder %v1105, 0.0
    %v1256 = vand.u32 %v1105, 2147483648
    %v1257 = vsel %vm1255, %v1256, %v1254
    %v1258 = vrsqrt.pop %v1108
    %v1259 = vmul.f32 %v1108, %v1258
    %vm1260 = vcmp.eq.f32.partialorder %v1108, inf
    %v1261 = vsel %vm1260, %v1108, %v1259
    %vm1262 = vcmp.eq.f32.partialorder %v1108, 0.0
    %v1263 = vand.u32 %v1108, 2147483648
    %v1264 = vsel %vm1262, %v1263, %v1261
    %v1265 = vrsqrt.pop %v1111
    %v1266 = vmul.f32 %v1111, %v1265
    %vm1267 = vcmp.eq.f32.partialorder %v1111, inf
    %v1268 = vsel %vm1267, %v1111, %v1266
    %vm1269 = vcmp.eq.f32.partialorder %v1111, 0.0
    %v1270 = vand.u32 %v1111, 2147483648
    %v1271 = vsel %vm1269, %v1270, %v1268
    %v1272 = vrsqrt.pop %v1114
    %v1273 = vmul.f32 %v1114, %v1272
    %vm1274 = vcmp.eq.f32.partialorder %v1114, inf
    %v1275 = vsel %vm1274, %v1114, %v1273
    %vm1276 = vcmp.eq.f32.partialorder %v1114, 0.0
    %v1277 = vand.u32 %v1114, 2147483648
    %v1278 = vsel %vm1276, %v1277, %v1275
    %v1279 = vrsqrt.pop %v1117
    %v1280 = vmul.f32 %v1117, %v1279
    %vm1281 = vcmp.eq.f32.partialorder %v1117, inf
    %v1282 = vsel %vm1281, %v1117, %v1280
    %vm1283 = vcmp.eq.f32.partialorder %v1117, 0.0
    %v1284 = vand.u32 %v1117, 2147483648
    %v1285 = vsel %vm1283, %v1284, %v1282
    %v1286 = vrsqrt.pop %v1120
    %v1287 = vmul.f32 %v1120, %v1286
    %vm1288 = vcmp.eq.f32.partialorder %v1120, inf
    %v1289 = vsel %vm1288, %v1120, %v1287
    %vm1290 = vcmp.eq.f32.partialorder %v1120, 0.0
    %v1291 = vand.u32 %v1120, 2147483648
    %v1292 = vsel %vm1290, %v1291, %v1289
    %v1293 = vrsqrt.pop %v1123
    %v1294 = vmul.f32 %v1123, %v1293
    %vm1295 = vcmp.eq.f32.partialorder %v1123, inf
    %v1296 = vsel %vm1295, %v1123, %v1294
    %vm1297 = vcmp.eq.f32.partialorder %v1123, 0.0
    %v1298 = vand.u32 %v1123, 2147483648
    %v1299 = vsel %vm1297, %v1298, %v1296
    %v1300 = vrsqrt.pop %v1126
    %v1301 = vmul.f32 %v1126, %v1300
    %vm1302 = vcmp.eq.f32.partialorder %v1126, inf
    %v1303 = vsel %vm1302, %v1126, %v1301
    %vm1304 = vcmp.eq.f32.partialorder %v1126, 0.0
    %v1305 = vand.u32 %v1126, 2147483648
    %v1306 = vsel %vm1304, %v1305, %v1303
    %v1307 = vrsqrt.pop %v1129
    %v1308 = vmul.f32 %v1129, %v1307
    %vm1309 = vcmp.eq.f32.partialorder %v1129, inf
    %v1310 = vsel %vm1309, %v1129, %v1308
    %vm1311 = vcmp.eq.f32.partialorder %v1129, 0.0
    %v1312 = vand.u32 %v1129, 2147483648
    %v1313 = vsel %vm1311, %v1312, %v1310
    %v1314 = vrsqrt.pop %v1132
    %v1315 = vmul.f32 %v1132, %v1314
    %vm1316 = vcmp.eq.f32.partialorder %v1132, inf
    %v1317 = vsel %vm1316, %v1132, %v1315
    %vm1318 = vcmp.eq.f32.partialorder %v1132, 0.0
    %v1319 = vand.u32 %v1132, 2147483648
    %v1320 = vsel %vm1318, %v1319, %v1317
    %v1321 = vrsqrt.pop %v1135
    %v1322 = vmul.f32 %v1135, %v1321
    %vm1323 = vcmp.eq.f32.partialorder %v1135, inf
    %v1324 = vsel %vm1323, %v1135, %v1322
    %vm1325 = vcmp.eq.f32.partialorder %v1135, 0.0
    %v1326 = vand.u32 %v1135, 2147483648
    %v1327 = vsel %vm1325, %v1326, %v1324
    %v1328 = vrsqrt.pop %v1138
    %v1329 = vmul.f32 %v1138, %v1328
    %vm1330 = vcmp.eq.f32.partialorder %v1138, inf
    %v1331 = vsel %vm1330, %v1138, %v1329
    %vm1332 = vcmp.eq.f32.partialorder %v1138, 0.0
    %v1333 = vand.u32 %v1138, 2147483648
    %v1334 = vsel %vm1332, %v1333, %v1331
    %v1335 = vrsqrt.pop %v1141
    %v1336 = vmul.f32 %v1141, %v1335
    %vm1337 = vcmp.eq.f32.partialorder %v1141, inf
    %v1338 = vsel %vm1337, %v1141, %v1336
    %vm1339 = vcmp.eq.f32.partialorder %v1141, 0.0
    %v1340 = vand.u32 %v1141, 2147483648
    %v1341 = vsel %vm1339, %v1340, %v1338
    %v1342 = vrsqrt.pop %v1144
    %v1343 = vmul.f32 %v1144, %v1342
    %vm1344 = vcmp.eq.f32.partialorder %v1144, inf
    %v1345 = vsel %vm1344, %v1144, %v1343
    %vm1346 = vcmp.eq.f32.partialorder %v1144, 0.0
    %v1347 = vand.u32 %v1144, 2147483648
    %v1348 = vsel %vm1346, %v1347, %v1345
    %v1349 = vrsqrt.pop %v1147
    %v1350 = vmul.f32 %v1147, %v1349
    %vm1351 = vcmp.eq.f32.partialorder %v1147, inf
    %v1352 = vsel %vm1351, %v1147, %v1350
    %vm1353 = vcmp.eq.f32.partialorder %v1147, 0.0
    %v1354 = vand.u32 %v1147, 2147483648
    %v1355 = vsel %vm1353, %v1354, %v1352
    %v1356 = vrsqrt.pop %v1150
    %v1357 = vmul.f32 %v1150, %v1356
    %vm1358 = vcmp.eq.f32.partialorder %v1150, inf
    %v1359 = vsel %vm1358, %v1150, %v1357
    %vm1360 = vcmp.eq.f32.partialorder %v1150, 0.0
    %v1361 = vand.u32 %v1150, 2147483648
    %v1362 = vsel %vm1360, %v1361, %v1359
    %v1363 = vrsqrt.pop %v1153
    %v1364 = vmul.f32 %v1153, %v1363
    %vm1365 = vcmp.eq.f32.partialorder %v1153, inf
    %v1366 = vsel %vm1365, %v1153, %v1364
    %vm1367 = vcmp.eq.f32.partialorder %v1153, 0.0
    %v1368 = vand.u32 %v1153, 2147483648
    %v1369 = vsel %vm1367, %v1368, %v1366
    %v1370 = vrsqrt.pop %v1156
    %v1371 = vmul.f32 %v1156, %v1370
    %vm1372 = vcmp.eq.f32.partialorder %v1156, inf
    %v1373 = vsel %vm1372, %v1156, %v1371
    %vm1374 = vcmp.eq.f32.partialorder %v1156, 0.0
    %v1375 = vand.u32 %v1156, 2147483648
    %v1376 = vsel %vm1374, %v1375, %v1373
    %v1377 = vrsqrt.pop %v1159
    %v1378 = vmul.f32 %v1159, %v1377
    %vm1379 = vcmp.eq.f32.partialorder %v1159, inf
    %v1380 = vsel %vm1379, %v1159, %v1378
    %vm1381 = vcmp.eq.f32.partialorder %v1159, 0.0
    %v1382 = vand.u32 %v1159, 2147483648
    %v1383 = vsel %vm1381, %v1382, %v1380
    %v1386 = vlaneseq
    %v1387 = vshrl.u32 %v1386, 7
    %v1388 = vsub.s32 0, %v1387
    %v1389 = vrot.slane %v1024, %v1388
    %v1390 = vlaneseq
    %v1391 = vshrl.u32 %v1390, 7
    %v1392 = vsub.s32 1, %v1391
    %v1393 = vrot.slane %v1024, %v1392
    %v1394 = vlaneseq
    %v1395 = vshrl.u32 %v1394, 7
    %v1396 = vsub.s32 2, %v1395
    %v1397 = vrot.slane %v1024, %v1396
    %v1398 = vlaneseq
    %v1399 = vshrl.u32 %v1398, 7
    %v1400 = vsub.s32 3, %v1399
    %v1401 = vrot.slane %v1024, %v1400
    %v1402 = vlaneseq
    %v1403 = vshrl.u32 %v1402, 7
    %v1404 = vsub.s32 4, %v1403
    %v1405 = vrot.slane %v1024, %v1404
    %v1406 = vlaneseq
    %v1407 = vshrl.u32 %v1406, 7
    %v1408 = vsub.s32 5, %v1407
    %v1409 = vrot.slane %v1024, %v1408
    %v1410 = vlaneseq
    %v1411 = vshrl.u32 %v1410, 7
    %v1412 = vsub.s32 6, %v1411
    %v1413 = vrot.slane %v1024, %v1412
    %v1414 = vlaneseq
    %v1415 = vshrl.u32 %v1414, 7
    %v1416 = vsub.s32 7, %v1415
    %v1417 = vrot.slane %v1024, %v1416
    %v1418 = vlaneseq
    %v1419 = vshrl.u32 %v1418, 7
    %v1420 = vsub.s32 0, %v1419
    %v1421 = vrot.slane %v1031, %v1420
    %v1422 = vlaneseq
    %v1423 = vshrl.u32 %v1422, 7
    %v1424 = vsub.s32 1, %v1423
    %v1425 = vrot.slane %v1031, %v1424
    %v1426 = vlaneseq
    %v1427 = vshrl.u32 %v1426, 7
    %v1428 = vsub.s32 2, %v1427
    %v1429 = vrot.slane %v1031, %v1428
    %v1430 = vlaneseq
    %v1431 = vshrl.u32 %v1430, 7
    %v1432 = vsub.s32 3, %v1431
    %v1433 = vrot.slane %v1031, %v1432
    %v1434 = vlaneseq
    %v1435 = vshrl.u32 %v1434, 7
    %v1436 = vsub.s32 4, %v1435
    %v1437 = vrot.slane %v1031, %v1436
    %v1438 = vlaneseq
    %v1439 = vshrl.u32 %v1438, 7
    %v1440 = vsub.s32 5, %v1439
    %v1441 = vrot.slane %v1031, %v1440
    %v1442 = vlaneseq
    %v1443 = vshrl.u32 %v1442, 7
    %v1444 = vsub.s32 6, %v1443
    %v1445 = vrot.slane %v1031, %v1444
    %v1446 = vlaneseq
    %v1447 = vshrl.u32 %v1446, 7
    %v1448 = vsub.s32 7, %v1447
    %v1449 = vrot.slane %v1031, %v1448
    %v1466 = vmul.f32 %v1166, %v1389
    %v1467 = vmul.f32 %v1173, %v1389
    %v1468 = vmul.f32 %v1180, %v1393
    %v1469 = vmul.f32 %v1187, %v1393
    %v1470 = vmul.f32 %v1194, %v1397
    %v1471 = vmul.f32 %v1201, %v1397
    %v1472 = vmul.f32 %v1208, %v1401
    %v1473 = vmul.f32 %v1215, %v1401
    %v1474 = vmul.f32 %v1222, %v1405
    %v1475 = vmul.f32 %v1229, %v1405
    %v1476 = vmul.f32 %v1236, %v1409
    %v1477 = vmul.f32 %v1243, %v1409
    %v1478 = vmul.f32 %v1250, %v1413
    %v1479 = vmul.f32 %v1257, %v1413
    %v1480 = vmul.f32 %v1264, %v1417
    %v1481 = vmul.f32 %v1271, %v1417
    %v1482 = vmul.f32 %v1278, %v1421
    %v1483 = vmul.f32 %v1285, %v1421
    %v1484 = vmul.f32 %v1292, %v1425
    %v1485 = vmul.f32 %v1299, %v1425
    %v1486 = vmul.f32 %v1306, %v1429
    %v1487 = vmul.f32 %v1313, %v1429
    %v1488 = vmul.f32 %v1320, %v1433
    %v1489 = vmul.f32 %v1327, %v1433
    %v1490 = vmul.f32 %v1334, %v1437
    %v1491 = vmul.f32 %v1341, %v1437
    %v1492 = vmul.f32 %v1348, %v1441
    %v1493 = vmul.f32 %v1355, %v1441
    %v1494 = vmul.f32 %v1362, %v1445
    %v1495 = vmul.f32 %v1369, %v1445
    %v1496 = vmul.f32 %v1376, %v1449
    %v1497 = vmul.f32 %v1383, %v1449
    %v1498 = vmax.f32 %v1466, 1e-08
    %v1499 = vmax.f32 %v1467, 1e-08
    %v1500 = vmax.f32 %v1468, 1e-08
    %v1501 = vmax.f32 %v1469, 1e-08
    %v1502 = vmax.f32 %v1470, 1e-08
    %v1503 = vmax.f32 %v1471, 1e-08
    %v1504 = vmax.f32 %v1472, 1e-08
    %v1505 = vmax.f32 %v1473, 1e-08
    %v1506 = vmax.f32 %v1474, 1e-08
    %v1507 = vmax.f32 %v1475, 1e-08
    %v1508 = vmax.f32 %v1476, 1e-08
    %v1509 = vmax.f32 %v1477, 1e-08
    %v1510 = vmax.f32 %v1478, 1e-08
    %v1511 = vmax.f32 %v1479, 1e-08
    %v1512 = vmax.f32 %v1480, 1e-08
    %v1513 = vmax.f32 %v1481, 1e-08
    %v1514 = vmax.f32 %v1482, 1e-08
    %v1515 = vmax.f32 %v1483, 1e-08
    %v1516 = vmax.f32 %v1484, 1e-08
    %v1517 = vmax.f32 %v1485, 1e-08
    %v1518 = vmax.f32 %v1486, 1e-08
    %v1519 = vmax.f32 %v1487, 1e-08
    %v1520 = vmax.f32 %v1488, 1e-08
    %v1521 = vmax.f32 %v1489, 1e-08
    %v1522 = vmax.f32 %v1490, 1e-08
    %v1523 = vmax.f32 %v1491, 1e-08
    %v1524 = vmax.f32 %v1492, 1e-08
    %v1525 = vmax.f32 %v1493, 1e-08
    %v1526 = vmax.f32 %v1494, 1e-08
    %v1527 = vmax.f32 %v1495, 1e-08
    %v1528 = vmax.f32 %v1496, 1e-08
    %v1529 = vmax.f32 %v1497, 1e-08
    %v1530 = vrcp.pop %v1498
    %v1531 = vmul.f32 %v916, %v1530
    %v1532 = vrcp.pop %v1499
    %v1533 = vmul.f32 %v919, %v1532
    %v1534 = vrcp.pop %v1500
    %v1535 = vmul.f32 %v922, %v1534
    %v1536 = vrcp.pop %v1501
    %v1537 = vmul.f32 %v925, %v1536
    %v1538 = vrcp.pop %v1502
    %v1539 = vmul.f32 %v928, %v1538
    %v1540 = vrcp.pop %v1503
    %v1541 = vmul.f32 %v931, %v1540
    %v1542 = vrcp.pop %v1504
    %v1543 = vmul.f32 %v934, %v1542
    %v1544 = vrcp.pop %v1505
    %v1545 = vmul.f32 %v937, %v1544
    %v1546 = vrcp.pop %v1506
    %v1547 = vmul.f32 %v940, %v1546
    %v1548 = vrcp.pop %v1507
    %v1549 = vmul.f32 %v943, %v1548
    %v1550 = vrcp.pop %v1508
    %v1551 = vmul.f32 %v946, %v1550
    %v1552 = vrcp.pop %v1509
    %v1553 = vmul.f32 %v949, %v1552
    %v1554 = vrcp.pop %v1510
    %v1555 = vmul.f32 %v952, %v1554
    %v1556 = vrcp.pop %v1511
    %v1557 = vmul.f32 %v955, %v1556
    %v1558 = vrcp.pop %v1512
    %v1559 = vmul.f32 %v958, %v1558
    %v1560 = vrcp.pop %v1513
    %v1561 = vmul.f32 %v961, %v1560
    %v1562 = vrcp.pop %v1514
    %v1563 = vmul.f32 %v964, %v1562
    %v1564 = vrcp.pop %v1515
    %v1565 = vmul.f32 %v967, %v1564
    %v1566 = vrcp.pop %v1516
    %v1567 = vmul.f32 %v970, %v1566
    %v1568 = vrcp.pop %v1517
    %v1569 = vmul.f32 %v973, %v1568
    %v1570 = vrcp.pop %v1518
    %v1571 = vmul.f32 %v976, %v1570
    %v1572 = vrcp.pop %v1519
    %v1573 = vmul.f32 %v979, %v1572
    %v1574 = vrcp.pop %v1520
    %v1575 = vmul.f32 %v982, %v1574
    %v1576 = vrcp.pop %v1521
    %v1577 = vmul.f32 %v985, %v1576
    %v1578 = vrcp.pop %v1522
    %v1579 = vmul.f32 %v988, %v1578
    %v1580 = vrcp.pop %v1523
    %v1581 = vmul.f32 %v991, %v1580
    %v1582 = vrcp.pop %v1524
    %v1583 = vmul.f32 %v994, %v1582
    %v1584 = vrcp.pop %v1525
    %v1585 = vmul.f32 %v997, %v1584
    %v1586 = vrcp.pop %v1526
    %v1587 = vmul.f32 %v1000, %v1586
    %v1588 = vrcp.pop %v1527
    %v1589 = vmul.f32 %v1003, %v1588
    %v1590 = vrcp.pop %v1528
    %v1591 = vmul.f32 %v1006, %v1590
    %v1592 = vrcp.pop %v1529
    %v1593 = vmul.f32 %v1009, %v1592
    %1595 = vset.pattern.permute.xlu0 8
    %1596 = vperm.xlu0 %1595, %v619
    %v1597 = vpop.permute.xlu0 %1596
    %1600 = vset.pattern.permute.xlu0 8
    %1601 = vperm.xlu0 %1600, %v620
    %v1602 = vpop.permute.xlu0 %1601
    %1636 = vset.pattern.permute.xlu0 0
    %1637 = vperm.xlu0 %1636, %v1531
    %v1638 = vpop.permute.xlu0 %1637
    %1639 = vset.pattern.permute.xlu0 0
    %1640 = vperm.xlu0 %1639, %v1533
    %v1641 = vpop.permute.xlu0 %1640
    %1642 = vset.pattern.permute.xlu0 0
    %1643 = vperm.xlu0 %1642, %v1535
    %v1644 = vpop.permute.xlu0 %1643
    %1645 = vset.pattern.permute.xlu0 0
    %1646 = vperm.xlu0 %1645, %v1537
    %v1647 = vpop.permute.xlu0 %1646
    %1648 = vset.pattern.permute.xlu0 0
    %1649 = vperm.xlu0 %1648, %v1539
    %v1650 = vpop.permute.xlu0 %1649
    %1651 = vset.pattern.permute.xlu0 0
    %1652 = vperm.xlu0 %1651, %v1541
    %v1653 = vpop.permute.xlu0 %1652
    %1654 = vset.pattern.permute.xlu0 0
    %1655 = vperm.xlu0 %1654, %v1543
    %v1656 = vpop.permute.xlu0 %1655
    %1657 = vset.pattern.permute.xlu0 0
    %1658 = vperm.xlu0 %1657, %v1545
    %v1659 = vpop.permute.xlu0 %1658
    %1660 = vset.pattern.permute.xlu0 0
    %1661 = vperm.xlu0 %1660, %v1547
    %v1662 = vpop.permute.xlu0 %1661
    %1663 = vset.pattern.permute.xlu0 0
    %1664 = vperm.xlu0 %1663, %v1549
    %v1665 = vpop.permute.xlu0 %1664
    %1666 = vset.pattern.permute.xlu0 0
    %1667 = vperm.xlu0 %1666, %v1551
    %v1668 = vpop.permute.xlu0 %1667
    %1669 = vset.pattern.permute.xlu0 0
    %1670 = vperm.xlu0 %1669, %v1553
    %v1671 = vpop.permute.xlu0 %1670
    %1672 = vset.pattern.permute.xlu0 0
    %1673 = vperm.xlu0 %1672, %v1555
    %v1674 = vpop.permute.xlu0 %1673
    %1675 = vset.pattern.permute.xlu0 0
    %1676 = vperm.xlu0 %1675, %v1557
    %v1677 = vpop.permute.xlu0 %1676
    %1678 = vset.pattern.permute.xlu0 0
    %1679 = vperm.xlu0 %1678, %v1559
    %v1680 = vpop.permute.xlu0 %1679
    %1681 = vset.pattern.permute.xlu0 0
    %1682 = vperm.xlu0 %1681, %v1561
    %v1683 = vpop.permute.xlu0 %1682
    %1684 = vset.pattern.permute.xlu0 0
    %1685 = vperm.xlu0 %1684, %v1563
    %v1686 = vpop.permute.xlu0 %1685
    %1687 = vset.pattern.permute.xlu0 0
    %1688 = vperm.xlu0 %1687, %v1565
    %v1689 = vpop.permute.xlu0 %1688
    %1690 = vset.pattern.permute.xlu0 0
    %1691 = vperm.xlu0 %1690, %v1567
    %v1692 = vpop.permute.xlu0 %1691
    %1693 = vset.pattern.permute.xlu0 0
    %1694 = vperm.xlu0 %1693, %v1569
    %v1695 = vpop.permute.xlu0 %1694
    %1696 = vset.pattern.permute.xlu0 0
    %1697 = vperm.xlu0 %1696, %v1571
    %v1698 = vpop.permute.xlu0 %1697
    %1699 = vset.pattern.permute.xlu0 0
    %1700 = vperm.xlu0 %1699, %v1573
    %v1701 = vpop.permute.xlu0 %1700
    %1702 = vset.pattern.permute.xlu0 0
    %1703 = vperm.xlu0 %1702, %v1575
    %v1704 = vpop.permute.xlu0 %1703
    %1705 = vset.pattern.permute.xlu0 0
    %1706 = vperm.xlu0 %1705, %v1577
    %v1707 = vpop.permute.xlu0 %1706
    %1708 = vset.pattern.permute.xlu0 0
    %1709 = vperm.xlu0 %1708, %v1579
    %v1710 = vpop.permute.xlu0 %1709
    %1711 = vset.pattern.permute.xlu0 0
    %1712 = vperm.xlu0 %1711, %v1581
    %v1713 = vpop.permute.xlu0 %1712
    %1714 = vset.pattern.permute.xlu0 0
    %1715 = vperm.xlu0 %1714, %v1583
    %v1716 = vpop.permute.xlu0 %1715
    %1717 = vset.pattern.permute.xlu0 0
    %1718 = vperm.xlu0 %1717, %v1585
    %v1719 = vpop.permute.xlu0 %1718
    %1720 = vset.pattern.permute.xlu0 0
    %1721 = vperm.xlu0 %1720, %v1587
    %v1722 = vpop.permute.xlu0 %1721
    %1723 = vset.pattern.permute.xlu0 0
    %1724 = vperm.xlu0 %1723, %v1589
    %v1725 = vpop.permute.xlu0 %1724
    %1726 = vset.pattern.permute.xlu0 0
    %1727 = vperm.xlu0 %1726, %v1591
    %v1728 = vpop.permute.xlu0 %1727
    %1729 = vset.pattern.permute.xlu0 0
    %1730 = vperm.xlu0 %1729, %v1593
    %v1731 = vpop.permute.xlu0 %1730
    %v1732 = vlaneseq
    %v1733 = vand.u32 %v1732, 127
    %v1734 = vlaneseq
    %v1735 = vshrl.u32 %v1734, 7
    %v1736 = vsub.s32 %v1733, %v1735
    %v1737 = vrot.slane %v1638, %v1736
    %v1738 = vadd.s32 %v1733, 4294967288
    %v1739 = vlaneseq
    %v1740 = vshrl.u32 %v1739, 7
    %v1741 = vsub.s32 %v1738, %v1740
    %v1742 = vrot.slane %v1641, %v1741
    %vm1743 = vcmask 130112
    %v1744 = vsel %vm1743, %v1742, %v1737
    %v1745 = vlaneseq
    %v1746 = vshrl.u32 %v1745, 7
    %v1747 = vsub.s32 %v1733, %v1746
    %v1748 = vrot.slane %v1644, %v1747
    %v1749 = vlaneseq
    %v1750 = vshrl.u32 %v1749, 7
    %v1751 = vsub.s32 %v1738, %v1750
    %v1752 = vrot.slane %v1647, %v1751
    %v1753 = vsel %vm1743, %v1752, %v1748
    %v1754 = vlaneseq
    %v1755 = vshrl.u32 %v1754, 7
    %v1756 = vsub.s32 %v1733, %v1755
    %v1757 = vrot.slane %v1650, %v1756
    %v1758 = vlaneseq
    %v1759 = vshrl.u32 %v1758, 7
    %v1760 = vsub.s32 %v1738, %v1759
    %v1761 = vrot.slane %v1653, %v1760
    %v1762 = vsel %vm1743, %v1761, %v1757
    %v1763 = vlaneseq
    %v1764 = vshrl.u32 %v1763, 7
    %v1765 = vsub.s32 %v1733, %v1764
    %v1766 = vrot.slane %v1656, %v1765
    %v1767 = vlaneseq
    %v1768 = vshrl.u32 %v1767, 7
    %v1769 = vsub.s32 %v1738, %v1768
    %v1770 = vrot.slane %v1659, %v1769
    %v1771 = vsel %vm1743, %v1770, %v1766
    %v1772 = vlaneseq
    %v1773 = vshrl.u32 %v1772, 7
    %v1774 = vsub.s32 %v1733, %v1773
    %v1775 = vrot.slane %v1662, %v1774
    %v1776 = vlaneseq
    %v1777 = vshrl.u32 %v1776, 7
    %v1778 = vsub.s32 %v1738, %v1777
    %v1779 = vrot.slane %v1665, %v1778
    %v1780 = vsel %vm1743, %v1779, %v1775
    %v1781 = vlaneseq
    %v1782 = vshrl.u32 %v1781, 7
    %v1783 = vsub.s32 %v1733, %v1782
    %v1784 = vrot.slane %v1668, %v1783
    %v1785 = vlaneseq
    %v1786 = vshrl.u32 %v1785, 7
    %v1787 = vsub.s32 %v1738, %v1786
    %v1788 = vrot.slane %v1671, %v1787
    %v1789 = vsel %vm1743, %v1788, %v1784
    %v1790 = vlaneseq
    %v1791 = vshrl.u32 %v1790, 7
    %v1792 = vsub.s32 %v1733, %v1791
    %v1793 = vrot.slane %v1674, %v1792
    %v1794 = vlaneseq
    %v1795 = vshrl.u32 %v1794, 7
    %v1796 = vsub.s32 %v1738, %v1795
    %v1797 = vrot.slane %v1677, %v1796
    %v1798 = vsel %vm1743, %v1797, %v1793
    %v1799 = vlaneseq
    %v1800 = vshrl.u32 %v1799, 7
    %v1801 = vsub.s32 %v1733, %v1800
    %v1802 = vrot.slane %v1680, %v1801
    %v1803 = vlaneseq
    %v1804 = vshrl.u32 %v1803, 7
    %v1805 = vsub.s32 %v1738, %v1804
    %v1806 = vrot.slane %v1683, %v1805
    %v1807 = vsel %vm1743, %v1806, %v1802
    %v1808 = vlaneseq
    %v1809 = vshrl.u32 %v1808, 7
    %v1810 = vsub.s32 %v1733, %v1809
    %v1811 = vrot.slane %v1686, %v1810
    %v1812 = vlaneseq
    %v1813 = vshrl.u32 %v1812, 7
    %v1814 = vsub.s32 %v1738, %v1813
    %v1815 = vrot.slane %v1689, %v1814
    %v1816 = vsel %vm1743, %v1815, %v1811
    %v1817 = vlaneseq
    %v1818 = vshrl.u32 %v1817, 7
    %v1819 = vsub.s32 %v1733, %v1818
    %v1820 = vrot.slane %v1692, %v1819
    %v1821 = vlaneseq
    %v1822 = vshrl.u32 %v1821, 7
    %v1823 = vsub.s32 %v1738, %v1822
    %v1824 = vrot.slane %v1695, %v1823
    %v1825 = vsel %vm1743, %v1824, %v1820
    %v1826 = vlaneseq
    %v1827 = vshrl.u32 %v1826, 7
    %v1828 = vsub.s32 %v1733, %v1827
    %v1829 = vrot.slane %v1698, %v1828
    %v1830 = vlaneseq
    %v1831 = vshrl.u32 %v1830, 7
    %v1832 = vsub.s32 %v1738, %v1831
    %v1833 = vrot.slane %v1701, %v1832
    %v1834 = vsel %vm1743, %v1833, %v1829
    %v1835 = vlaneseq
    %v1836 = vshrl.u32 %v1835, 7
    %v1837 = vsub.s32 %v1733, %v1836
    %v1838 = vrot.slane %v1704, %v1837
    %v1839 = vlaneseq
    %v1840 = vshrl.u32 %v1839, 7
    %v1841 = vsub.s32 %v1738, %v1840
    %v1842 = vrot.slane %v1707, %v1841
    %v1843 = vsel %vm1743, %v1842, %v1838
    %v1844 = vlaneseq
    %v1845 = vshrl.u32 %v1844, 7
    %v1846 = vsub.s32 %v1733, %v1845
    %v1847 = vrot.slane %v1710, %v1846
    %v1848 = vlaneseq
    %v1849 = vshrl.u32 %v1848, 7
    %v1850 = vsub.s32 %v1738, %v1849
    %v1851 = vrot.slane %v1713, %v1850
    %v1852 = vsel %vm1743, %v1851, %v1847
    %v1853 = vlaneseq
    %v1854 = vshrl.u32 %v1853, 7
    %v1855 = vsub.s32 %v1733, %v1854
    %v1856 = vrot.slane %v1716, %v1855
    %v1857 = vlaneseq
    %v1858 = vshrl.u32 %v1857, 7
    %v1859 = vsub.s32 %v1738, %v1858
    %v1860 = vrot.slane %v1719, %v1859
    %v1861 = vsel %vm1743, %v1860, %v1856
    %v1862 = vlaneseq
    %v1863 = vshrl.u32 %v1862, 7
    %v1864 = vsub.s32 %v1733, %v1863
    %v1865 = vrot.slane %v1722, %v1864
    %v1866 = vlaneseq
    %v1867 = vshrl.u32 %v1866, 7
    %v1868 = vsub.s32 %v1738, %v1867
    %v1869 = vrot.slane %v1725, %v1868
    %v1870 = vsel %vm1743, %v1869, %v1865
    %v1871 = vlaneseq
    %v1872 = vshrl.u32 %v1871, 7
    %v1873 = vsub.s32 %v1733, %v1872
    %v1874 = vrot.slane %v1728, %v1873
    %v1875 = vlaneseq
    %v1876 = vshrl.u32 %v1875, 7
    %v1877 = vsub.s32 %v1738, %v1876
    %v1878 = vrot.slane %v1731, %v1877
    %v1879 = vsel %vm1743, %v1878, %v1874
    %vm1880 = vcmask 1041409
    %v1881 = vsel %vm1880, %v1753, %v1744
    %vm1882 = vcmask 1042434
    %v1883 = vsel %vm1882, %v1762, %v1881
    %vm1884 = vcmask 1043459
    %v1885 = vsel %vm1884, %v1771, %v1883
    %vm1886 = vcmask 1044484
    %v1887 = vsel %vm1886, %v1780, %v1885
    %vm1888 = vcmask 1045509
    %v1889 = vsel %vm1888, %v1789, %v1887
    %vm1890 = vcmask 1046534
    %v1891 = vsel %vm1890, %v1798, %v1889
    %vm1892 = vcmask 1047559
    %v1893 = vsel %vm1892, %v1807, %v1891
    %v1894 = vsel %vm1880, %v1825, %v1816
    %v1895 = vsel %vm1882, %v1834, %v1894
    %v1896 = vsel %vm1884, %v1843, %v1895
    %v1897 = vsel %vm1886, %v1852, %v1896
    %v1898 = vsel %vm1888, %v1861, %v1897
    %v1899 = vsel %vm1890, %v1870, %v1898
    %v1900 = vsel %vm1892, %v1879, %v1899
    %v1903 = vmul.f32 %v1597, %v1893
    %v1904 = vmul.f32 %v1602, %v1900
    %vm1905 = vcmask 130048
    %v1906 = vsel %vm1905, %v1903, -inf
    %1907 = vmax.xlane.f32.xlu0 %v1906
    %v1908 = vpop.xlane.xlu0 %1907
    %v1909 = vsel %vm1905, %v1904, -inf
    %1910 = vmax.xlane.f32.xlu0 %v1909
    %v1911 = vpop.xlane.xlu0 %1910
    %v1912 = vsub.f32 %v1903, %v1908
    %v1913 = vsub.f32 %v1904, %v1911
    %v1914 = vmul.f32 %v1912, 1.442695
    %v1915 = vpow.pop %v1914
    %v1916 = vmul.f32 %v1913, 1.442695
    %v1917 = vpow.pop %v1916
    %v1918 = vsel %vm1905, %v1915, 0.0
    %1919 = vadd.xlane.f32.xlu0 %v1918
    %v1920 = vpop.xlane.xlu0 %1919
    %v1921 = vsel %vm1905, %v1917, 0.0
    %1922 = vadd.xlane.f32.xlu0 %v1921
    %v1923 = vpop.xlane.xlu0 %1922
    %v1924 = vrcp.pop %v1920
    %v1925 = vmul.f32 %v1915, %v1924
    %v1926 = vrcp.pop %v1923
    %v1927 = vmul.f32 %v1917, %v1926
    %1929 = vset.pattern.permute.xlu0 9
    %1930 = vperm.xlu0 %1929, %v630
    %v1931 = vpop.permute.xlu0 %1930
    %1934 = vset.pattern.permute.xlu0 9
    %1935 = vperm.xlu0 %1934, %v632
    %v1936 = vpop.permute.xlu0 %1935
    %v1938 = vmul.f32 %v1931, %v1925
    %v1939 = vmul.f32 %v1936, %v1927
    %v1940 = vsub.f32 1.0, %v630
    %v1941 = vsub.f32 1.0, %v632
    %v1942 = vld [vmem:[%s4] sm:$0xff]
    %v1943 = vld [vmem:[%s4 + $0x8] sm:$0xff]
    %1945 = vset.pattern.permute.xlu0 9
    %1946 = vperm.xlu0 %1945, %v1940
    %v1947 = vpop.permute.xlu0 %1946
    %1950 = vset.pattern.permute.xlu0 9
    %1951 = vperm.xlu0 %1950, %v1941
    %v1952 = vpop.permute.xlu0 %1951
    %v1954 = vmul.f32 %v1947, %v1942
    %v1955 = vmul.f32 %v1952, %v1943
    %v1956 = vadd.f32 %v1938, %v1954
    %v1957 = vadd.f32 %v1939, %v1955
    %1960 = vrot.lane.b32.xlu0 %v1956, 113
    %v1961 = vpop.permute.xlu0 %1960
    %1962 = vrot.lane.b32.xlu0 %v1957, 113
    %v1963 = vpop.permute.xlu0 %1962
    %1966 = vrot.lane.b32.xlu0 %v1956, 1
    %v1967 = vpop.permute.xlu0 %1966
    %1968 = vrot.lane.b32.xlu0 %v1957, 1
    %v1969 = vpop.permute.xlu0 %1968
    %vm1972 = vcmask 7168
    %v1973 = vsel %vm1972, %v1961, %v1967
    %v1974 = vsel %vm1972, %v1963, %v1969
    %1976 = vset.pattern.permute.xlu0 10
    %1977 = vperm.xlu0 %1976, %v662
    %v1978 = vpop.permute.xlu0 %1977
    %1981 = vset.pattern.permute.xlu0 10
    %1982 = vperm.xlu0 %1981, %v664
    %v1983 = vpop.permute.xlu0 %1982
    %v1985 = vmul.f32 %v1973, %v1978
    %v1986 = vmul.f32 %v1974, %v1983
    %1987 = vset.pattern.permute.xlu0 11
    %1988 = vperm.xlu0 %1987, %v662
    %v1989 = vpop.permute.xlu0 %1988
    %1991 = vset.pattern.permute.xlu0 11
    %1992 = vperm.xlu0 %1991, %v664
    %v1993 = vpop.permute.xlu0 %1992
    %v1995 = vmul.f32 %v1956, %v1989
    %v1996 = vmul.f32 %v1957, %v1993
    %v1997 = vadd.f32 %v1985, %v1995
    %v1998 = vadd.f32 %v1986, %v1996
    %1999 = vrot.lane.b32.xlu0 %v1956, 127
    %v2000 = vpop.permute.xlu0 %1999
    %2001 = vrot.lane.b32.xlu0 %v1957, 127
    %v2002 = vpop.permute.xlu0 %2001
    %2005 = vrot.lane.b32.xlu0 %v1956, 15
    %v2006 = vpop.permute.xlu0 %2005
    %2007 = vrot.lane.b32.xlu0 %v1957, 15
    %v2008 = vpop.permute.xlu0 %2007
    %vm2011 = vcmask 121856
    %v2012 = vsel %vm2011, %v2000, %v2006
    %v2013 = vsel %vm2011, %v2002, %v2008
    %2014 = vset.pattern.permute.xlu0 12
    %2015 = vperm.xlu0 %2014, %v662
    %v2016 = vpop.permute.xlu0 %2015
    %2018 = vset.pattern.permute.xlu0 12
    %2019 = vperm.xlu0 %2018, %v664
    %v2020 = vpop.permute.xlu0 %2019
    %v2022 = vmul.f32 %v2012, %v2016
    %v2023 = vmul.f32 %v2013, %v2020
    %v2024 = vadd.f32 %v1997, %v2022
    %v2025 = vadd.f32 %v1998, %v2023
    %v2026 = vlog2.pop %v2024
    %v2027 = vmul.f32 %v2026, 0.6931472
    %v2028 = vlog2.pop %v2025
    %v2029 = vmul.f32 %v2028, 0.6931472
    %2031 = vset.pattern.permute.xlu0 13
    %2032 = vperm.xlu0 %2031, %v665
    %v2033 = vpop.permute.xlu0 %2032
    %2036 = vset.pattern.permute.xlu0 13
    %2037 = vperm.xlu0 %2036, %v666
    %v2038 = vpop.permute.xlu0 %2037
    %v2040 = vmul.f32 %v2033, %v2027
    %v2041 = vmul.f32 %v2038, %v2029
    %v2042 = vmul.f32 %v2040, 1.442695
    %v2043 = vpow.pop %v2042
    %v2044 = vmul.f32 %v2041, 1.442695
    %v2045 = vpow.pop %v2044
    %v2046 = vsel %vm1905, %v2043, 0.0
    %2047 = vadd.xlane.f32.xlu0 %v2046
    %v2048 = vpop.xlane.xlu0 %2047
    %v2049 = vsel %vm1905, %v2045, 0.0
    %2050 = vadd.xlane.f32.xlu0 %v2049
    %v2051 = vpop.xlane.xlu0 %2050
    %v2052 = vadd.f32 %v2048, 1e-16
    %v2053 = vadd.f32 %v2051, 1e-16
    %v2054 = vrcp.pop %v2052
    %v2055 = vmul.f32 %v2043, %v2054
    %v2056 = vrcp.pop %v2053
    %v2057 = vmul.f32 %v2045, %v2056
    %v2058 = vlaneseq
    %v2059 = vshrl.u32 %v2058, 7
    %v2060 = vsub.s32 0, %v2059
    %v2061 = vrot.slane %v2055, %v2060
    %2063 = vbcast.lane.b32.xlu0 %v2061, 256
    %v2064 = vpop.permute.xlu0 %2063
    %s2066 = sor.u32 256, 8
    %2067 = vbcast.lane.b32.xlu0 %v2061, %s2066
    %v2068 = vpop.permute.xlu0 %2067
    %v2069 = vlaneseq
    %v2070 = vshrl.u32 %v2069, 7
    %v2071 = vsub.s32 1, %v2070
    %v2072 = vrot.slane %v2055, %v2071
    %2074 = vbcast.lane.b32.xlu0 %v2072, 256
    %v2075 = vpop.permute.xlu0 %2074
    %s2077 = sor.u32 256, 8
    %2078 = vbcast.lane.b32.xlu0 %v2072, %s2077
    %v2079 = vpop.permute.xlu0 %2078
    %v2080 = vlaneseq
    %v2081 = vshrl.u32 %v2080, 7
    %v2082 = vsub.s32 2, %v2081
    %v2083 = vrot.slane %v2055, %v2082
    %2085 = vbcast.lane.b32.xlu0 %v2083, 256
    %v2086 = vpop.permute.xlu0 %2085
    %s2088 = sor.u32 256, 8
    %2089 = vbcast.lane.b32.xlu0 %v2083, %s2088
    %v2090 = vpop.permute.xlu0 %2089
    %v2091 = vlaneseq
    %v2092 = vshrl.u32 %v2091, 7
    %v2093 = vsub.s32 3, %v2092
    %v2094 = vrot.slane %v2055, %v2093
    %2096 = vbcast.lane.b32.xlu0 %v2094, 256
    %v2097 = vpop.permute.xlu0 %2096
    %s2099 = sor.u32 256, 8
    %2100 = vbcast.lane.b32.xlu0 %v2094, %s2099
    %v2101 = vpop.permute.xlu0 %2100
    %v2102 = vlaneseq
    %v2103 = vshrl.u32 %v2102, 7
    %v2104 = vsub.s32 4, %v2103
    %v2105 = vrot.slane %v2055, %v2104
    %2107 = vbcast.lane.b32.xlu0 %v2105, 256
    %v2108 = vpop.permute.xlu0 %2107
    %s2110 = sor.u32 256, 8
    %2111 = vbcast.lane.b32.xlu0 %v2105, %s2110
    %v2112 = vpop.permute.xlu0 %2111
    %v2113 = vlaneseq
    %v2114 = vshrl.u32 %v2113, 7
    %v2115 = vsub.s32 5, %v2114
    %v2116 = vrot.slane %v2055, %v2115
    %2118 = vbcast.lane.b32.xlu0 %v2116, 256
    %v2119 = vpop.permute.xlu0 %2118
    %s2121 = sor.u32 256, 8
    %2122 = vbcast.lane.b32.xlu0 %v2116, %s2121
    %v2123 = vpop.permute.xlu0 %2122
    %v2124 = vlaneseq
    %v2125 = vshrl.u32 %v2124, 7
    %v2126 = vsub.s32 6, %v2125
    %v2127 = vrot.slane %v2055, %v2126
    %2129 = vbcast.lane.b32.xlu0 %v2127, 256
    %v2130 = vpop.permute.xlu0 %2129
    %s2132 = sor.u32 256, 8
    %2133 = vbcast.lane.b32.xlu0 %v2127, %s2132
    %v2134 = vpop.permute.xlu0 %2133
    %v2135 = vlaneseq
    %v2136 = vshrl.u32 %v2135, 7
    %v2137 = vsub.s32 7, %v2136
    %v2138 = vrot.slane %v2055, %v2137
    %2140 = vbcast.lane.b32.xlu0 %v2138, 256
    %v2141 = vpop.permute.xlu0 %2140
    %s2143 = sor.u32 256, 8
    %2144 = vbcast.lane.b32.xlu0 %v2138, %s2143
    %v2145 = vpop.permute.xlu0 %2144
    %v2146 = vlaneseq
    %v2147 = vshrl.u32 %v2146, 7
    %v2148 = vsub.s32 0, %v2147
    %v2149 = vrot.slane %v2057, %v2148
    %2151 = vbcast.lane.b32.xlu0 %v2149, 256
    %v2152 = vpop.permute.xlu0 %2151
    %s2154 = sor.u32 256, 8
    %2155 = vbcast.lane.b32.xlu0 %v2149, %s2154
    %v2156 = vpop.permute.xlu0 %2155
    %v2157 = vlaneseq
    %v2158 = vshrl.u32 %v2157, 7
    %v2159 = vsub.s32 1, %v2158
    %v2160 = vrot.slane %v2057, %v2159
    %2162 = vbcast.lane.b32.xlu0 %v2160, 256
    %v2163 = vpop.permute.xlu0 %2162
    %s2165 = sor.u32 256, 8
    %2166 = vbcast.lane.b32.xlu0 %v2160, %s2165
    %v2167 = vpop.permute.xlu0 %2166
    %v2168 = vlaneseq
    %v2169 = vshrl.u32 %v2168, 7
    %v2170 = vsub.s32 2, %v2169
    %v2171 = vrot.slane %v2057, %v2170
    %2173 = vbcast.lane.b32.xlu0 %v2171, 256
    %v2174 = vpop.permute.xlu0 %2173
    %s2176 = sor.u32 256, 8
    %2177 = vbcast.lane.b32.xlu0 %v2171, %s2176
    %v2178 = vpop.permute.xlu0 %2177
    %v2179 = vlaneseq
    %v2180 = vshrl.u32 %v2179, 7
    %v2181 = vsub.s32 3, %v2180
    %v2182 = vrot.slane %v2057, %v2181
    %2184 = vbcast.lane.b32.xlu0 %v2182, 256
    %v2185 = vpop.permute.xlu0 %2184
    %s2187 = sor.u32 256, 8
    %2188 = vbcast.lane.b32.xlu0 %v2182, %s2187
    %v2189 = vpop.permute.xlu0 %2188
    %v2190 = vlaneseq
    %v2191 = vshrl.u32 %v2190, 7
    %v2192 = vsub.s32 4, %v2191
    %v2193 = vrot.slane %v2057, %v2192
    %2195 = vbcast.lane.b32.xlu0 %v2193, 256
    %v2196 = vpop.permute.xlu0 %2195
    %s2198 = sor.u32 256, 8
    %2199 = vbcast.lane.b32.xlu0 %v2193, %s2198
    %v2200 = vpop.permute.xlu0 %2199
    %v2201 = vlaneseq
    %v2202 = vshrl.u32 %v2201, 7
    %v2203 = vsub.s32 5, %v2202
    %v2204 = vrot.slane %v2057, %v2203
    %2206 = vbcast.lane.b32.xlu0 %v2204, 256
    %v2207 = vpop.permute.xlu0 %2206
    %s2209 = sor.u32 256, 8
    %2210 = vbcast.lane.b32.xlu0 %v2204, %s2209
    %v2211 = vpop.permute.xlu0 %2210
    %v2212 = vlaneseq
    %v2213 = vshrl.u32 %v2212, 7
    %v2214 = vsub.s32 6, %v2213
    %v2215 = vrot.slane %v2057, %v2214
    %2217 = vbcast.lane.b32.xlu0 %v2215, 256
    %v2218 = vpop.permute.xlu0 %2217
    %s2220 = sor.u32 256, 8
    %2221 = vbcast.lane.b32.xlu0 %v2215, %s2220
    %v2222 = vpop.permute.xlu0 %2221
    %v2223 = vlaneseq
    %v2224 = vshrl.u32 %v2223, 7
    %v2225 = vsub.s32 7, %v2224
    %v2226 = vrot.slane %v2057, %v2225
    %2228 = vbcast.lane.b32.xlu0 %v2226, 256
    %v2229 = vpop.permute.xlu0 %2228
    %s2231 = sor.u32 256, 8
    %2232 = vbcast.lane.b32.xlu0 %v2226, %s2231
    %v2233 = vpop.permute.xlu0 %2232
    %v2234 = vmul.f32 %v21, %v2064
    %v2235 = vmul.f32 %v22, %v2068
    %v2236 = vmul.f32 %v23, %v2075
    %v2237 = vmul.f32 %v24, %v2079
    %v2238 = vmul.f32 %v25, %v2086
    %v2239 = vmul.f32 %v26, %v2090
    %v2240 = vmul.f32 %v27, %v2097
    %v2241 = vmul.f32 %v28, %v2101
    %v2242 = vmul.f32 %v29, %v2108
    %v2243 = vmul.f32 %v30, %v2112
    %v2244 = vmul.f32 %v31, %v2119
    %v2245 = vmul.f32 %v32, %v2123
    %v2246 = vmul.f32 %v33, %v2130
    %v2247 = vmul.f32 %v34, %v2134
    %v2248 = vmul.f32 %v35, %v2141
    %v2249 = vmul.f32 %v36, %v2145
    %v2250 = vmul.f32 %v37, %v2152
    %v2251 = vmul.f32 %v38, %v2156
    %v2252 = vmul.f32 %v39, %v2163
    %v2253 = vmul.f32 %v40, %v2167
    %v2254 = vmul.f32 %v41, %v2174
    %v2255 = vmul.f32 %v42, %v2178
    %v2256 = vmul.f32 %v43, %v2185
    %v2257 = vmul.f32 %v44, %v2189
    %v2258 = vmul.f32 %v45, %v2196
    %v2259 = vmul.f32 %v46, %v2200
    %v2260 = vmul.f32 %v47, %v2207
    %v2261 = vmul.f32 %v48, %v2211
    %v2262 = vmul.f32 %v49, %v2218
    %v2263 = vmul.f32 %v50, %v2222
    %v2264 = vmul.f32 %v51, %v2229
    %v2265 = vmul.f32 %v52, %v2233
    %v2266 = vsel %vm913, %v2234, 0.0
    %v2267 = vsel %vm913, %v2235, 0.0
    %v2268 = vadd.f32 %v2266, %v2267
    %v2269 = vrot.slane %v2268, 4
    %v2270 = vadd.f32 %v2268, %v2269
    %v2271 = vrot.slane %v2270, 2
    %v2272 = vadd.f32 %v2270, %v2271
    %v2273 = vrot.slane %v2272, 1
    %v2274 = vadd.f32 %v2272, %v2273
    %v2275 = vsel %vm913, %v2236, 0.0
    %v2276 = vsel %vm913, %v2237, 0.0
    %v2277 = vadd.f32 %v2275, %v2276
    %v2278 = vrot.slane %v2277, 4
    %v2279 = vadd.f32 %v2277, %v2278
    %v2280 = vrot.slane %v2279, 2
    %v2281 = vadd.f32 %v2279, %v2280
    %v2282 = vrot.slane %v2281, 1
    %v2283 = vadd.f32 %v2281, %v2282
    %v2284 = vsel %vm913, %v2238, 0.0
    %v2285 = vsel %vm913, %v2239, 0.0
    %v2286 = vadd.f32 %v2284, %v2285
    %v2287 = vrot.slane %v2286, 4
    %v2288 = vadd.f32 %v2286, %v2287
    %v2289 = vrot.slane %v2288, 2
    %v2290 = vadd.f32 %v2288, %v2289
    %v2291 = vrot.slane %v2290, 1
    %v2292 = vadd.f32 %v2290, %v2291
    %v2293 = vsel %vm913, %v2240, 0.0
    %v2294 = vsel %vm913, %v2241, 0.0
    %v2295 = vadd.f32 %v2293, %v2294
    %v2296 = vrot.slane %v2295, 4
    %v2297 = vadd.f32 %v2295, %v2296
    %v2298 = vrot.slane %v2297, 2
    %v2299 = vadd.f32 %v2297, %v2298
    %v2300 = vrot.slane %v2299, 1
    %v2301 = vadd.f32 %v2299, %v2300
    %v2302 = vsel %vm913, %v2242, 0.0
    %v2303 = vsel %vm913, %v2243, 0.0
    %v2304 = vadd.f32 %v2302, %v2303
    %v2305 = vrot.slane %v2304, 4
    %v2306 = vadd.f32 %v2304, %v2305
    %v2307 = vrot.slane %v2306, 2
    %v2308 = vadd.f32 %v2306, %v2307
    %v2309 = vrot.slane %v2308, 1
    %v2310 = vadd.f32 %v2308, %v2309
    %v2311 = vsel %vm913, %v2244, 0.0
    %v2312 = vsel %vm913, %v2245, 0.0
    %v2313 = vadd.f32 %v2311, %v2312
    %v2314 = vrot.slane %v2313, 4
    %v2315 = vadd.f32 %v2313, %v2314
    %v2316 = vrot.slane %v2315, 2
    %v2317 = vadd.f32 %v2315, %v2316
    %v2318 = vrot.slane %v2317, 1
    %v2319 = vadd.f32 %v2317, %v2318
    %v2320 = vsel %vm913, %v2246, 0.0
    %v2321 = vsel %vm913, %v2247, 0.0
    %v2322 = vadd.f32 %v2320, %v2321
    %v2323 = vrot.slane %v2322, 4
    %v2324 = vadd.f32 %v2322, %v2323
    %v2325 = vrot.slane %v2324, 2
    %v2326 = vadd.f32 %v2324, %v2325
    %v2327 = vrot.slane %v2326, 1
    %v2328 = vadd.f32 %v2326, %v2327
    %v2329 = vsel %vm913, %v2248, 0.0
    %v2330 = vsel %vm913, %v2249, 0.0
    %v2331 = vadd.f32 %v2329, %v2330
    %v2332 = vrot.slane %v2331, 4
    %v2333 = vadd.f32 %v2331, %v2332
    %v2334 = vrot.slane %v2333, 2
    %v2335 = vadd.f32 %v2333, %v2334
    %v2336 = vrot.slane %v2335, 1
    %v2337 = vadd.f32 %v2335, %v2336
    %v2338 = vsel %vm913, %v2250, 0.0
    %v2339 = vsel %vm913, %v2251, 0.0
    %v2340 = vadd.f32 %v2338, %v2339
    %v2341 = vrot.slane %v2340, 4
    %v2342 = vadd.f32 %v2340, %v2341
    %v2343 = vrot.slane %v2342, 2
    %v2344 = vadd.f32 %v2342, %v2343
    %v2345 = vrot.slane %v2344, 1
    %v2346 = vadd.f32 %v2344, %v2345
    %v2347 = vsel %vm913, %v2252, 0.0
    %v2348 = vsel %vm913, %v2253, 0.0
    %v2349 = vadd.f32 %v2347, %v2348
    %v2350 = vrot.slane %v2349, 4
    %v2351 = vadd.f32 %v2349, %v2350
    %v2352 = vrot.slane %v2351, 2
    %v2353 = vadd.f32 %v2351, %v2352
    %v2354 = vrot.slane %v2353, 1
    %v2355 = vadd.f32 %v2353, %v2354
    %v2356 = vsel %vm913, %v2254, 0.0
    %v2357 = vsel %vm913, %v2255, 0.0
    %v2358 = vadd.f32 %v2356, %v2357
    %v2359 = vrot.slane %v2358, 4
    %v2360 = vadd.f32 %v2358, %v2359
    %v2361 = vrot.slane %v2360, 2
    %v2362 = vadd.f32 %v2360, %v2361
    %v2363 = vrot.slane %v2362, 1
    %v2364 = vadd.f32 %v2362, %v2363
    %v2365 = vsel %vm913, %v2256, 0.0
    %v2366 = vsel %vm913, %v2257, 0.0
    %v2367 = vadd.f32 %v2365, %v2366
    %v2368 = vrot.slane %v2367, 4
    %v2369 = vadd.f32 %v2367, %v2368
    %v2370 = vrot.slane %v2369, 2
    %v2371 = vadd.f32 %v2369, %v2370
    %v2372 = vrot.slane %v2371, 1
    %v2373 = vadd.f32 %v2371, %v2372
    %v2374 = vsel %vm913, %v2258, 0.0
    %v2375 = vsel %vm913, %v2259, 0.0
    %v2376 = vadd.f32 %v2374, %v2375
    %v2377 = vrot.slane %v2376, 4
    %v2378 = vadd.f32 %v2376, %v2377
    %v2379 = vrot.slane %v2378, 2
    %v2380 = vadd.f32 %v2378, %v2379
    %v2381 = vrot.slane %v2380, 1
    %v2382 = vadd.f32 %v2380, %v2381
    %v2383 = vsel %vm913, %v2260, 0.0
    %v2384 = vsel %vm913, %v2261, 0.0
    %v2385 = vadd.f32 %v2383, %v2384
    %v2386 = vrot.slane %v2385, 4
    %v2387 = vadd.f32 %v2385, %v2386
    %v2388 = vrot.slane %v2387, 2
    %v2389 = vadd.f32 %v2387, %v2388
    %v2390 = vrot.slane %v2389, 1
    %v2391 = vadd.f32 %v2389, %v2390
    %v2392 = vsel %vm913, %v2262, 0.0
    %v2393 = vsel %vm913, %v2263, 0.0
    %v2394 = vadd.f32 %v2392, %v2393
    %v2395 = vrot.slane %v2394, 4
    %v2396 = vadd.f32 %v2394, %v2395
    %v2397 = vrot.slane %v2396, 2
    %v2398 = vadd.f32 %v2396, %v2397
    %v2399 = vrot.slane %v2398, 1
    %v2400 = vadd.f32 %v2398, %v2399
    %v2401 = vsel %vm913, %v2264, 0.0
    %v2402 = vsel %vm913, %v2265, 0.0
    %v2403 = vadd.f32 %v2401, %v2402
    %v2404 = vrot.slane %v2403, 4
    %v2405 = vadd.f32 %v2403, %v2404
    %v2406 = vrot.slane %v2405, 2
    %v2407 = vadd.f32 %v2405, %v2406
    %v2408 = vrot.slane %v2407, 1
    %v2409 = vadd.f32 %v2407, %v2408
    %v2426 = vsel %vm1880, %v2283, %v2274
    %v2427 = vsel %vm1882, %v2292, %v2426
    %v2428 = vsel %vm1884, %v2301, %v2427
    %v2429 = vsel %vm1886, %v2310, %v2428
    %v2430 = vsel %vm1888, %v2319, %v2429
    %v2431 = vsel %vm1890, %v2328, %v2430
    %v2432 = vsel %vm1892, %v2337, %v2431
    %v2433 = vsel %vm1880, %v2355, %v2346
    %v2434 = vsel %vm1882, %v2364, %v2433
    %v2435 = vsel %vm1884, %v2373, %v2434
    %v2436 = vsel %vm1886, %v2382, %v2435
    %v2437 = vsel %vm1888, %v2391, %v2436
    %v2438 = vsel %vm1890, %v2400, %v2437
    %v2439 = vsel %vm1892, %v2409, %v2438
    %2444 = vrot.lane.b32.xlu0 %v2055, 8
    %v2445 = vpop.permute.xlu0 %2444
    %2446 = vrot.lane.b32.xlu0 %v2057, 8
    %v2447 = vpop.permute.xlu0 %2446
    %v2450 = vsel %vm913, %v2432, %v2445
    %v2451 = vsel %vm913, %v2439, %v2447
    %vm2452 = vcmask 195584
    %v2453 = vsel %vm2452, %v2450, 0.0
    %v2454 = vsel %vm2452, %v2451, 0.0
    %2455 = vst [vmem:[#allocation2] sm:$0xff] %v2453
    %2456 = vst [vmem:[#allocation2 + $0x8] sm:$0xff] %v2454
    // Predicated region
    $region22: #{tpu_custom_call.1} parent=1 // pred_check
      _
    $region23: #{tpu_custom_call.1} parent=1 // pred_check_branch
      %2458 = sbr.rel (0) target = $region25
    $region24: #{tpu_custom_call.1} parent=1 // pred_region
      %s2460 = ssub.s32 256, 256
      %2461 = vsyncadd [#allocation3], %s2460
      %s2462 = sshll.u32 [#allocation2], 4
      %s2463 = int_to_ptr.vmem [resolvable:$true] %s2462
      %2468 = dma.vmem_to_hbm [thread:$0]  %s2463, 256, %s5, [#allocation3], 128, 128, 8
    $region25: #{tpu_custom_call.1} parent=1 // pred_fallthru
      _
    // Predicated region
    $region26: #{tpu_custom_call.1} parent=1 // pred_check
      _
    $region27: #{tpu_custom_call.1} parent=1 // pred_check_branch
      %2470 = sbr.rel (0) target = $region29
    $region28: #{tpu_custom_call.1} parent=1 // pred_region
      %2471 = dma.done [#allocation3], 256
    $region29: #{tpu_custom_call.1} parent=1 // pred_fallthru
      _
    %2472 = vsyncpa [#allocation3], 1

</llo_original>
